<compile_context>
chip_gen: v5e
topology: v5e:2x2
jax: 0.10.0
libtpu: 0.0.40
codegen_flags: <defaults>
</compile_context>

<pallas_src>
import jax
import jax.numpy as jnp
from jax import lax
from jax.experimental import pallas as pl
from jax.experimental.pallas import tpu as pltpu

# ---- model config (small but 128-lane-aligned) ----
SEQ = 256            # flattened tokens
EMBED = 256          # hidden_size
NUM_HEADS = 2        # num_attention_heads
HEAD_DIM = EMBED // NUM_HEADS   # 128
FFN = 4 * EMBED      # ffn_dim
LN_EPS = 1e-5
DO_LAYER_NORM_BEFORE = True     # OPT default; activation_function = 'relu'

BLOCK_M = 128        # token tile for the qkv-projection kernel
BLOCK_Q = 128        # query tile for attention+MLP kernel
BLOCK_K = 128        # kv tile for attention+MLP kernel


def _layer_norm(x, w, b):
    mu = jnp.mean(x, axis=-1, keepdims=True)
    var = jnp.mean((x - mu) ** 2, axis=-1, keepdims=True)
    return (x - mu) * lax.rsqrt(var + LN_EPS) * w + b


# ----------------------------------------------------------------------------
# Kernel 1: self_attn_layer_norm (pre-LN) + qkv_proj, head-major bf16 q/k/v out.
# ----------------------------------------------------------------------------
def _ln_qkv_kernel(x_ref, ln_w_ref, ln_b_ref, w_ref, b_ref, q_ref, k_ref, v_ref):
    D = x_ref.shape[1]
    H, _, hd = q_ref.shape
    scaling = hd ** -0.5

    x = x_ref[...]                                           # [tm, D] f32
    h = _layer_norm(x, ln_w_ref[...], ln_b_ref[...]) if DO_LAYER_NORM_BEFORE else x
    qkv = jnp.dot(h.astype(jnp.bfloat16), w_ref[...],
                  preferred_element_type=jnp.float32) + b_ref[...]   # [tm, 3D] f32

    # Write head-major [H, tm, hd]; hd == 128 so every slice is a lane-aligned slab.
    for hi in range(H):
        q_ref[hi] = (qkv[:, hi * hd:(hi + 1) * hd] * scaling).astype(q_ref.dtype)
        k_ref[hi] = qkv[:, D + hi * hd: D + (hi + 1) * hd].astype(k_ref.dtype)
        v_ref[hi] = qkv[:, 2 * D + hi * hd: 2 * D + (hi + 1) * hd].astype(v_ref.dtype)


# ----------------------------------------------------------------------------
# Kernel 2: flash-style causal MHA + out_proj + residual + final LN + MLP + residual.
# Grid = (num_q_tiles, num_kv_tiles); kv axis is the online-softmax accumulation axis.
# ----------------------------------------------------------------------------
def _attn_mlp_kernel(x_ref, q_ref, k_ref, v_ref,
                     ow_ref, ob_ref, ln2w_ref, ln2b_ref,
                     f1w_ref, f1b_ref, f2w_ref, f2b_ref,
                     o_ref,
                     m_sc, l_sc, acc_sc, attn_sc):
    qi = pl.program_id(0)
    ki = pl.program_id(1)
    H, block_q, hd = acc_sc.shape
    block_k = k_ref.shape[1]

    @pl.when(ki == 0)
    def _init():
        m_sc[...] = jnp.full(m_sc.shape, -jnp.inf, m_sc.dtype)
        l_sc[...] = jnp.zeros(l_sc.shape, l_sc.dtype)
        acc_sc[...] = jnp.zeros(acc_sc.shape, acc_sc.dtype)

    # Skip fully-masked (upper-triangular) kv tiles entirely.
    @pl.when(ki <= qi)
    def _compute():
        q = q_ref[...]                                       # [H, tq, hd] bf16 (pre-scaled)
        k = k_ref[...]                                       # [H, tk, hd] bf16
        v = v_ref[...]                                       # [H, tk, hd] bf16

        # Batched-head QK^T without materializing a transpose.
        s = lax.dot_general(q, k, (((2,), (2,)), ((0,), (0,))),
                            preferred_element_type=jnp.float32)      # [H, tq, tk] f32

        q_pos = qi * block_q + lax.broadcasted_iota(jnp.int32, (1, block_q, block_k), 1)
        k_pos = ki * block_k + lax.broadcasted_iota(jnp.int32, (1, block_q, block_k), 2)
        s = jnp.where(k_pos <= q_pos, s, -1e30)

        m_prev = m_sc[...]                                   # [H, tq, 1]
        m_new = jnp.maximum(m_prev, jnp.max(s, axis=-1, keepdims=True))
        alpha = jnp.exp(m_prev - m_new)
        p = jnp.exp(s - m_new)                               # [H, tq, tk] f32
        l_sc[...] = alpha * l_sc[...] + jnp.sum(p, axis=-1, keepdims=True)
        acc_sc[...] = alpha * acc_sc[...] + lax.dot_general(
            p.astype(v.dtype), v, (((2,), (1,)), ((0,), (0,))),
            preferred_element_type=jnp.float32)              # [H, tq, hd] f32
        m_sc[...] = m_new

    # Diagonal tile is the last kv tile with any unmasked work for this q tile:
    # normalize, then run the fused epilogue and write the output row block.
    @pl.when(ki == qi)
    def _finalize():
        inv_l = pl.reciprocal(l_sc[...], approx=True)        # EUP, [H, tq, 1]
        for hi in range(H):                                  # lane-aligned slab writes
            attn_sc[:, hi * hd:(hi + 1) * hd] = acc_sc[hi] * inv_l[hi]

        attn = attn_sc[...].astype(jnp.bfloat16)             # [tq, D]
        y = jnp.dot(attn, ow_ref[...],
                    preferred_element_type=jnp.float32) + ob_ref[...]
        h = x_ref[...] + y                                   # residual (f32)

        h2 = _layer_norm(h, ln2w_ref[...], ln2b_ref[...]) if DO_LAYER_NORM_BEFORE else h
        h2 = jnp.dot(h2.astype(jnp.bfloat16), f1w_ref[...],
                     preferred_element_type=jnp.float32) + f1b_ref[...]
        h2 = jnp.maximum(h2, 0.0)                            # ReLU
        h2 = jnp.dot(h2.astype(jnp.bfloat16), f2w_ref[...],
                     preferred_element_type=jnp.float32) + f2b_ref[...]
        o_ref[...] = (h + h2).astype(o_ref.dtype)


# ----------------------------------------------------------------------------
# Wrapper
# ----------------------------------------------------------------------------
def opt_decoder_layer(x, params):
    """x: [S, D] float32. params: pre-transposed ([in, out]) weights; matmul weights bf16."""
    S, D = x.shape
    H, hd, F = NUM_HEADS, HEAD_DIM, FFN
    assert S % BLOCK_M == 0 and S % BLOCK_Q == 0 and S % BLOCK_K == 0

    # ---- kernel 1: pre-LN + qkv projection ----
    qkv_call = pl.pallas_call(
        _ln_qkv_kernel,
        out_shape=(jax.ShapeDtypeStruct((H, S, hd), jnp.bfloat16),
                   jax.ShapeDtypeStruct((H, S, hd), jnp.bfloat16),
                   jax.ShapeDtypeStruct((H, S, hd), jnp.bfloat16)),
        grid_spec=pltpu.PrefetchScalarGridSpec(
            num_scalar_prefetch=0,
            grid=(S // BLOCK_M,),
            in_specs=[
                pl.BlockSpec((BLOCK_M, D), lambda i: (i, 0)),      # x
                pl.BlockSpec((1, D), lambda i: (0, 0)),            # ln1_w
                pl.BlockSpec((1, D), lambda i: (0, 0)),            # ln1_b
                pl.BlockSpec((D, 3 * D), lambda i: (0, 0)),        # qkv_w (bf16)
                pl.BlockSpec((1, 3 * D), lambda i: (0, 0)),        # qkv_b
            ],
            out_specs=(pl.BlockSpec((H, BLOCK_M, hd), lambda i: (0, i, 0)),
                       pl.BlockSpec((H, BLOCK_M, hd), lambda i: (0, i, 0)),
                       pl.BlockSpec((H, BLOCK_M, hd), lambda i: (0, i, 0))),
        ),
        compiler_params=pltpu.CompilerParams(dimension_semantics=("parallel",)),
    )
    q, k, v = qkv_call(x, params["ln1_w"], params["ln1_b"],
                       params["qkv_w"], params["qkv_b"])

    # ---- kernel 2: flash attention + out proj + residual + LN + MLP + residual ----
    nq, nk = S // BLOCK_Q, S // BLOCK_K
    layer_call = pl.pallas_call(
        _attn_mlp_kernel,
        out_shape=jax.ShapeDtypeStruct((S, D), x.dtype),
        grid_spec=pltpu.PrefetchScalarGridSpec(
            num_scalar_prefetch=0,
            grid=(nq, nk),
            in_specs=[
                pl.BlockSpec((BLOCK_Q, D), lambda qi, ki: (qi, 0)),        # x (residual)
                pl.BlockSpec((H, BLOCK_Q, hd), lambda qi, ki: (0, qi, 0)), # q
                pl.BlockSpec((H, BLOCK_K, hd), lambda qi, ki: (0, ki, 0)), # k
                pl.BlockSpec((H, BLOCK_K, hd), lambda qi, ki: (0, ki, 0)), # v
                pl.BlockSpec((D, D), lambda qi, ki: (0, 0)),               # out_w (bf16)
                pl.BlockSpec((1, D), lambda qi, ki: (0, 0)),               # out_b
                pl.BlockSpec((1, D), lambda qi, ki: (0, 0)),               # ln2_w
                pl.BlockSpec((1, D), lambda qi, ki: (0, 0)),               # ln2_b
                pl.BlockSpec((D, F), lambda qi, ki: (0, 0)),               # fc1_w (bf16)
                pl.BlockSpec((1, F), lambda qi, ki: (0, 0)),               # fc1_b
                pl.BlockSpec((F, D), lambda qi, ki: (0, 0)),               # fc2_w (bf16)
                pl.BlockSpec((1, D), lambda qi, ki: (0, 0)),               # fc2_b
            ],
            out_specs=pl.BlockSpec((BLOCK_Q, D), lambda qi, ki: (qi, 0)),
            scratch_shapes=[
                pltpu.VMEM((H, BLOCK_Q, 1), jnp.float32),   # running max
                pltpu.VMEM((H, BLOCK_Q, 1), jnp.float32),   # running denom
                pltpu.VMEM((H, BLOCK_Q, hd), jnp.float32),  # attention accumulator
                pltpu.VMEM((BLOCK_Q, D), jnp.float32),      # head-merged attn slab
            ],
        ),
        compiler_params=pltpu.CompilerParams(
            dimension_semantics=("parallel", "arbitrary")),
    )
    return layer_call(x, q, k, v,
                      params["out_w"], params["out_b"],
                      params["ln2_w"], params["ln2_b"],
                      params["fc1_w"], params["fc1_b"],
                      params["fc2_w"], params["fc2_b"])


# ----------------------------------------------------------------------------
# Pure-JAX reference (same mixed-precision math) for correctness checking.
# ----------------------------------------------------------------------------
def _ref_decoder_layer(x, p):
    D, H, hd = EMBED, NUM_HEADS, HEAD_DIM
    S = x.shape[0]

    def ln(h, w, b):
        mu = jnp.mean(h, axis=-1, keepdims=True)
        var = jnp.mean((h - mu) ** 2, axis=-1, keepdims=True)
        return (h - mu) * lax.rsqrt(var + LN_EPS) * w + b

    residual = x
    h = ln(x, p["ln1_w"], p["ln1_b"])
    qkv = jnp.dot(h.astype(jnp.bfloat16), p["qkv_w"],
                  preferred_element_type=jnp.float32) + p["qkv_b"]
    q = (qkv[:, :D] * (hd ** -0.5)).astype(jnp.bfloat16).reshape(S, H, hd)
    k = qkv[:, D:2 * D].astype(jnp.bfloat16).reshape(S, H, hd)
    v = qkv[:, 2 * D:].astype(jnp.bfloat16).reshape(S, H, hd)

    s = jnp.einsum("qhd,khd->hqk", q, k, preferred_element_type=jnp.float32)
    mask = jnp.tril(jnp.ones((S, S), dtype=bool))
    s = jnp.where(mask[None], s, -1e30)
    m = jnp.max(s, axis=-1, keepdims=True)
    pexp = jnp.exp(s - m)
    l = jnp.sum(pexp, axis=-1, keepdims=True)
    pv = jnp.einsum("hqk,khd->hqd", pexp.astype(jnp.bfloat16), v,
                    preferred_element_type=jnp.float32)
    attn = (pv / l)
    attn = jnp.swapaxes(attn, 0, 1).reshape(S, D)

    y = jnp.dot(attn.astype(jnp.bfloat16), p["out_w"],
                preferred_element_type=jnp.float32) + p["out_b"]
    h = residual + y
    residual = h
    h2 = ln(h, p["ln2_w"], p["ln2_b"])
    h2 = jnp.dot(h2.astype(jnp.bfloat16), p["fc1_w"],
                 preferred_element_type=jnp.float32) + p["fc1_b"]
    h2 = jnp.maximum(h2, 0.0)
    h2 = jnp.dot(h2.astype(jnp.bfloat16), p["fc2_w"],
                 preferred_element_type=jnp.float32) + p["fc2_b"]
    return residual + h2


def _make_params(key):
    ks = jax.random.split(key, 8)
    s = 0.02

    def w(kk, shape):
        return jax.random.normal(kk, shape, jnp.float32) * s

    # Linear weights stored as [in, out] (transpose of torch's [out, in]); matmul weights bf16.
    return {
        "ln1_w": jnp.ones((1, EMBED), jnp.float32),
        "ln1_b": jnp.zeros((1, EMBED), jnp.float32),
        "ln2_w": jnp.ones((1, EMBED), jnp.float32),
        "ln2_b": jnp.zeros((1, EMBED), jnp.float32),
        "qkv_w": w(ks[0], (EMBED, 3 * EMBED)).astype(jnp.bfloat16),
        "qkv_b": w(ks[1], (1, 3 * EMBED)),
        "out_w": w(ks[2], (EMBED, EMBED)).astype(jnp.bfloat16),
        "out_b": w(ks[3], (1, EMBED)),
        "fc1_w": w(ks[4], (EMBED, FFN)).astype(jnp.bfloat16),
        "fc1_b": w(ks[5], (1, FFN)),
        "fc2_w": w(ks[6], (FFN, EMBED)).astype(jnp.bfloat16),
        "fc2_b": w(ks[7], (1, EMBED)),
    }


if __name__ == "__main__":
    key = jax.random.PRNGKey(0)
    k_x, k_p = jax.random.split(key)
    x = jax.random.normal(k_x, (SEQ, EMBED), jnp.float32)
    params = _make_params(k_p)

    out = jax.block_until_ready(opt_decoder_layer(x, params))
    ref = jax.block_until_ready(_ref_decoder_layer(x, params))

    assert out.shape == (SEQ, EMBED) and out.dtype == jnp.float32
    max_err = jnp.max(jnp.abs(out - ref))
    assert jnp.allclose(out, ref, atol=5e-3, rtol=5e-3), f"max abs err {max_err}"
    print("KERNEL_OK")
</pallas_src>

<mosaic_0001>
module attributes {stable_mosaic.version = 11 : i64} {
  func.func @_ln_qkv_kernel(%arg0: i32, %arg1: memref<128x256xf32, #tpu.memory_space<vmem>>, %arg2: memref<1x256xf32, #tpu.memory_space<vmem>>, %arg3: memref<1x256xf32, #tpu.memory_space<vmem>>, %arg4: memref<256x768xbf16, #tpu.memory_space<vmem>>, %arg5: memref<1x768xf32, #tpu.memory_space<vmem>>, %arg6: memref<2x128x128xbf16, #tpu.memory_space<vmem>>, %arg7: memref<2x128x128xbf16, #tpu.memory_space<vmem>>, %arg8: memref<2x128x128xbf16, #tpu.memory_space<vmem>>) attributes {dimension_semantics = [#tpu.dimension_semantics<parallel>], iteration_bounds = array<i64: 2>, scalar_prefetch = 0 : i64, scratch_operands = 0 : i64, tpu.core_type = #tpu.core_type<tc>, window_params = [{transform_indices = @transform_0, window_bounds = array<i64: 128, 256>}, {pipeline_mode = #tpu.pipeline_mode<synchronous>, transform_indices = @transform_1, window_bounds = array<i64: 1, 256>}, {pipeline_mode = #tpu.pipeline_mode<synchronous>, transform_indices = @transform_2, window_bounds = array<i64: 1, 256>}, {pipeline_mode = #tpu.pipeline_mode<synchronous>, transform_indices = @transform_3, window_bounds = array<i64: 256, 768>}, {pipeline_mode = #tpu.pipeline_mode<synchronous>, transform_indices = @transform_4, window_bounds = array<i64: 1, 768>}, {transform_indices = @transform_5, window_bounds = array<i64: 2, 128, 128>}, {transform_indices = @transform_6, window_bounds = array<i64: 2, 128, 128>}, {transform_indices = @transform_7, window_bounds = array<i64: 2, 128, 128>}]} {
    %c0 = arith.constant 0 : index
    %c0_0 = arith.constant 0 : index
    %0 = vector.load %arg1[%c0, %c0_0] : memref<128x256xf32, #tpu.memory_space<vmem>>, vector<128x256xf32>
    %c0_1 = arith.constant 0 : index
    %c0_2 = arith.constant 0 : index
    %1 = vector.load %arg2[%c0_1, %c0_2] : memref<1x256xf32, #tpu.memory_space<vmem>>, vector<1x256xf32>
    %c0_3 = arith.constant 0 : index
    %c0_4 = arith.constant 0 : index
    %2 = vector.load %arg3[%c0_3, %c0_4] : memref<1x256xf32, #tpu.memory_space<vmem>>, vector<1x256xf32>
    %cst = arith.constant dense<0.000000e+00> : vector<128xf32>
    %3 = vector.multi_reduction <add>, %0, %cst [1] : vector<128x256xf32> to vector<128xf32>
    %4 = vector.shape_cast %3 : vector<128xf32> to vector<128x1xf32>
    %cst_5 = arith.constant 2.560000e+02 : f32
    %5 = vector.broadcast %cst_5 : f32 to vector<128x1xf32>
    %6 = arith.divf %4, %5 : vector<128x1xf32>
    %7 = vector.broadcast %6 : vector<128x1xf32> to vector<128x256xf32>
    %8 = arith.subf %0, %7 : vector<128x256xf32>
    %9 = arith.mulf %8, %8 : vector<128x256xf32>
    %cst_6 = arith.constant dense<0.000000e+00> : vector<128xf32>
    %10 = vector.multi_reduction <add>, %9, %cst_6 [1] : vector<128x256xf32> to vector<128xf32>
    %11 = vector.shape_cast %10 : vector<128xf32> to vector<128x1xf32>
    %cst_7 = arith.constant 2.560000e+02 : f32
    %12 = vector.broadcast %cst_7 : f32 to vector<128x1xf32>
    %13 = arith.divf %11, %12 : vector<128x1xf32>
    %14 = vector.broadcast %6 : vector<128x1xf32> to vector<128x256xf32>
    %15 = arith.subf %0, %14 : vector<128x256xf32>
    %cst_8 = arith.constant 9.99999974E-6 : f32
    %16 = vector.broadcast %cst_8 : f32 to vector<128x1xf32>
    %17 = arith.addf %13, %16 : vector<128x1xf32>
    %18 = math.rsqrt %17 : vector<128x1xf32>
    %19 = vector.broadcast %18 : vector<128x1xf32> to vector<128x256xf32>
    %20 = arith.mulf %15, %19 : vector<128x256xf32>
    %21 = vector.broadcast %1 : vector<1x256xf32> to vector<128x256xf32>
    %22 = arith.mulf %20, %21 : vector<128x256xf32>
    %23 = vector.broadcast %2 : vector<1x256xf32> to vector<128x256xf32>
    %24 = arith.addf %22, %23 : vector<128x256xf32>
    %25 = arith.truncf %24 : vector<128x256xf32> to vector<128x256xbf16>
    %c0_9 = arith.constant 0 : index
    %c0_10 = arith.constant 0 : index
    %26 = vector.load %arg4[%c0_9, %c0_10] : memref<256x768xbf16, #tpu.memory_space<vmem>>, vector<256x768xbf16>
    %cst_11 = arith.constant dense<0.000000e+00> : vector<128x768xf32>
    %27 = tpu.matmul %25, %26, %cst_11 {dimension_numbers = #tpu.dot_dimension_numbers<[1], [0], [0], [1], [0, 0, 1, 1], [], []>} : vector<128x256xbf16>, vector<256x768xbf16>, vector<128x768xf32> -> vector<128x768xf32>
    %c0_12 = arith.constant 0 : index
    %c0_13 = arith.constant 0 : index
    %28 = vector.load %arg5[%c0_12, %c0_13] : memref<1x768xf32, #tpu.memory_space<vmem>>, vector<1x768xf32>
    %29 = vector.broadcast %28 : vector<1x768xf32> to vector<128x768xf32>
    %30 = arith.addf %27, %29 : vector<128x768xf32>
    %31 = vector.extract_strided_slice %30 {offsets = [0, 0], sizes = [128, 128], strides = [1, 1]} : vector<128x768xf32> to vector<128x128xf32>
    %cst_14 = arith.constant 0.0883883461 : f32
    %32 = vector.broadcast %cst_14 : f32 to vector<128x128xf32>
    %33 = arith.mulf %31, %32 : vector<128x128xf32>
    %34 = arith.truncf %33 : vector<128x128xf32> to vector<128x128xbf16>
    %c0_15 = arith.constant 0 : index
    %c0_16 = arith.constant 0 : index
    %c0_17 = arith.constant 0 : index
    %35 = vector.load %arg6[%c0_15, %c0_16, %c0_17] : memref<2x128x128xbf16, #tpu.memory_space<vmem>>, vector<1x128x128xbf16>
    %36 = vector.shape_cast %35 : vector<1x128x128xbf16> to vector<128x128xbf16>
    %37 = vector.shape_cast %34 : vector<128x128xbf16> to vector<1x128x128xbf16>
    tpu.vector_store %arg6[%c0_15, %c0_16, %c0_17], %37 {strides = array<i32>} : memref<2x128x128xbf16, #tpu.memory_space<vmem>>, vector<1x128x128xbf16>,
    %38 = vector.extract_strided_slice %30 {offsets = [0, 256], sizes = [128, 128], strides = [1, 1]} : vector<128x768xf32> to vector<128x128xf32>
    %39 = arith.truncf %38 : vector<128x128xf32> to vector<128x128xbf16>
    %c0_18 = arith.constant 0 : index
    %c0_19 = arith.constant 0 : index
    %c0_20 = arith.constant 0 : index
    %40 = vector.load %arg7[%c0_18, %c0_19, %c0_20] : memref<2x128x128xbf16, #tpu.memory_space<vmem>>, vector<1x128x128xbf16>
    %41 = vector.shape_cast %40 : vector<1x128x128xbf16> to vector<128x128xbf16>
    %42 = vector.shape_cast %39 : vector<128x128xbf16> to vector<1x128x128xbf16>
    tpu.vector_store %arg7[%c0_18, %c0_19, %c0_20], %42 {strides = array<i32>} : memref<2x128x128xbf16, #tpu.memory_space<vmem>>, vector<1x128x128xbf16>,
    %43 = vector.extract_strided_slice %30 {offsets = [0, 512], sizes = [128, 128], strides = [1, 1]} : vector<128x768xf32> to vector<128x128xf32>
    %44 = arith.truncf %43 : vector<128x128xf32> to vector<128x128xbf16>
    %c0_21 = arith.constant 0 : index
    %c0_22 = arith.constant 0 : index
    %c0_23 = arith.constant 0 : index
    %45 = vector.load %arg8[%c0_21, %c0_22, %c0_23] : memref<2x128x128xbf16, #tpu.memory_space<vmem>>, vector<1x128x128xbf16>
    %46 = vector.shape_cast %45 : vector<1x128x128xbf16> to vector<128x128xbf16>
    %47 = vector.shape_cast %44 : vector<128x128xbf16> to vector<1x128x128xbf16>
    tpu.vector_store %arg8[%c0_21, %c0_22, %c0_23], %47 {strides = array<i32>} : memref<2x128x128xbf16, #tpu.memory_space<vmem>>, vector<1x128x128xbf16>,
    %48 = vector.extract_strided_slice %30 {offsets = [0, 128], sizes = [128, 128], strides = [1, 1]} : vector<128x768xf32> to vector<128x128xf32>
    %cst_24 = arith.constant 0.0883883461 : f32
    %49 = vector.broadcast %cst_24 : f32 to vector<128x128xf32>
    %50 = arith.mulf %48, %49 : vector<128x128xf32>
    %51 = arith.truncf %50 : vector<128x128xf32> to vector<128x128xbf16>
    %c1 = arith.constant 1 : index
    %c0_25 = arith.constant 0 : index
    %c0_26 = arith.constant 0 : index
    %52 = vector.load %arg6[%c1, %c0_25, %c0_26] : memref<2x128x128xbf16, #tpu.memory_space<vmem>>, vector<1x128x128xbf16>
    %53 = vector.shape_cast %52 : vector<1x128x128xbf16> to vector<128x128xbf16>
    %54 = vector.shape_cast %51 : vector<128x128xbf16> to vector<1x128x128xbf16>
    tpu.vector_store %arg6[%c1, %c0_25, %c0_26], %54 {strides = array<i32>} : memref<2x128x128xbf16, #tpu.memory_space<vmem>>, vector<1x128x128xbf16>,
    %55 = vector.extract_strided_slice %30 {offsets = [0, 384], sizes = [128, 128], strides = [1, 1]} : vector<128x768xf32> to vector<128x128xf32>
    %56 = arith.truncf %55 : vector<128x128xf32> to vector<128x128xbf16>
    %c1_27 = arith.constant 1 : index
    %c0_28 = arith.constant 0 : index
    %c0_29 = arith.constant 0 : index
    %57 = vector.load %arg7[%c1_27, %c0_28, %c0_29] : memref<2x128x128xbf16, #tpu.memory_space<vmem>>, vector<1x128x128xbf16>
    %58 = vector.shape_cast %57 : vector<1x128x128xbf16> to vector<128x128xbf16>
    %59 = vector.shape_cast %56 : vector<128x128xbf16> to vector<1x128x128xbf16>
    tpu.vector_store %arg7[%c1_27, %c0_28, %c0_29], %59 {strides = array<i32>} : memref<2x128x128xbf16, #tpu.memory_space<vmem>>, vector<1x128x128xbf16>,
    %60 = vector.extract_strided_slice %30 {offsets = [0, 640], sizes = [128, 128], strides = [1, 1]} : vector<128x768xf32> to vector<128x128xf32>
    %61 = arith.truncf %60 : vector<128x128xf32> to vector<128x128xbf16>
    %c1_30 = arith.constant 1 : index
    %c0_31 = arith.constant 0 : index
    %c0_32 = arith.constant 0 : index
    %62 = vector.load %arg8[%c1_30, %c0_31, %c0_32] : memref<2x128x128xbf16, #tpu.memory_space<vmem>>, vector<1x128x128xbf16>
    %63 = vector.shape_cast %62 : vector<1x128x128xbf16> to vector<128x128xbf16>
    %64 = vector.shape_cast %61 : vector<128x128xbf16> to vector<1x128x128xbf16>
    tpu.vector_store %arg8[%c1_30, %c0_31, %c0_32], %64 {strides = array<i32>} : memref<2x128x128xbf16, #tpu.memory_space<vmem>>, vector<1x128x128xbf16>,
    return
  }
  func.func @transform_0(%arg0: i32) -> (i32, i32) {
    %c0_i32 = arith.constant 0 : i32
    %c0_i32_0 = arith.constant 0 : i32
    return %arg0, %c0_i32 : i32, i32
  }
  func.func @transform_1(%arg0: i32) -> (i32, i32) {
    %c0_i32 = arith.constant 0 : i32
    %c0_i32_0 = arith.constant 0 : i32
    %c0_i32_1 = arith.constant 0 : i32
    return %c0_i32, %c0_i32_0 : i32, i32
  }
  func.func @transform_2(%arg0: i32) -> (i32, i32) {
    %c0_i32 = arith.constant 0 : i32
    %c0_i32_0 = arith.constant 0 : i32
    %c0_i32_1 = arith.constant 0 : i32
    return %c0_i32, %c0_i32_0 : i32, i32
  }
  func.func @transform_3(%arg0: i32) -> (i32, i32) {
    %c0_i32 = arith.constant 0 : i32
    %c0_i32_0 = arith.constant 0 : i32
    %c0_i32_1 = arith.constant 0 : i32
    return %c0_i32, %c0_i32_0 : i32, i32
  }
  func.func @transform_4(%arg0: i32) -> (i32, i32) {
    %c0_i32 = arith.constant 0 : i32
    %c0_i32_0 = arith.constant 0 : i32
    %c0_i32_1 = arith.constant 0 : i32
    return %c0_i32, %c0_i32_0 : i32, i32
  }
  func.func @transform_5(%arg0: i32) -> (i32, i32, i32) {
    %c0_i32 = arith.constant 0 : i32
    %c0_i32_0 = arith.constant 0 : i32
    %c0_i32_1 = arith.constant 0 : i32
    return %c0_i32, %arg0, %c0_i32_0 : i32, i32, i32
  }
  func.func @transform_6(%arg0: i32) -> (i32, i32, i32) {
    %c0_i32 = arith.constant 0 : i32
    %c0_i32_0 = arith.constant 0 : i32
    %c0_i32_1 = arith.constant 0 : i32
    return %c0_i32, %arg0, %c0_i32_0 : i32, i32, i32
  }
  func.func @transform_7(%arg0: i32) -> (i32, i32, i32) {
    %c0_i32 = arith.constant 0 : i32
    %c0_i32_0 = arith.constant 0 : i32
    %c0_i32_1 = arith.constant 0 : i32
    return %c0_i32, %arg0, %c0_i32_0 : i32, i32, i32
  }
}

</mosaic_0001>

<llo_original>
// kernel: tpu_custom_call.1
$region0: #{tpu_custom_call.1}
  #allocation0 [shape = 'u32[]', space=smem, size = 0x4, offset = 0x4, fixed_abs, tag = 'smem constant byte address 0x4 - core index']
  #allocation1 [shape = 'u32[72,128]{1,0:T(1,128)}', space=vmem, size = 0x9000, scoped, tag = 'internal scratch']
  #allocation15 [shape = 's32[]', space=sflag, size = 0x4, offset = 0, fixed_abs, tag = 'sflag constant byte address 0x0 - dummy sync flag']
  #allocation17 [shape = 's32[]', space=sflag, size = 0x4, offset = 0, fixed_abs, tag = 'sflag constant byte address 0x0 - dummy sync flag']
  #allocation19 [shape = 's32[]', space=sflag, size = 0x4, offset = 0, fixed_abs, tag = 'sflag constant byte address 0x0 - dummy sync flag']
  %s0 = inlined_call_operand.hbm [shape: f32[256,256], index: 0, kind: input, shape index: {}]
  %s1 = inlined_call_operand.hbm [shape: f32[1,256], index: 1, kind: input, shape index: {}]
  %s2 = inlined_call_operand.hbm [shape: f32[1,256], index: 2, kind: input, shape index: {}]
  %s3 = inlined_call_operand.hbm [shape: bf16[256,768], index: 3, kind: input, shape index: {}]
  %s4 = inlined_call_operand.hbm [shape: f32[1,768], index: 4, kind: input, shape index: {}]
  %s5 = inlined_call_operand.hbm [shape: bf16[2,256,128], index: 5, kind: output, shape index: {0}]
  %s6 = inlined_call_operand.hbm [shape: bf16[2,256,128], index: 6, kind: output, shape index: {1}]
  %s7 = inlined_call_operand.hbm [shape: bf16[2,256,128], index: 7, kind: output, shape index: {2}]
  %8 = xla_tuple %s5, %s6, %s7
  %s9 = sld [smem:[#allocation0]]
  $region89: #{tpu_custom_call.1} parent=0
    _
  %s11 = ssub.s32 1, %s9
  %s12 = scalar_select 0, %s11, %s9
  $region1: #{tpu_custom_call.1} parent=0
    #allocation2 [shape = 'u8[262144]{0}', space=vmem, size = 0x40000, scoped, tag = 'input window, operand 0']
    #allocation3 [shape = 's32[2]{0}', space=sflag, size = 0x8, scoped, tag = 'scoped memory for tpu_custom_call.1']
    #allocation4 [shape = 's32[2]{0}', space=sflag, size = 0x8, scoped, tag = 'scoped memory for tpu_custom_call.1']
    #allocation5 [shape = 'u8[1024]{0}', space=vmem, size = 0x400, scoped, tag = 'input window, operand 1, single buffered']
    #allocation6 [shape = 's32[1]{0}', space=sflag, size = 0x4, scoped, tag = 'scoped memory for tpu_custom_call.1']
    #allocation7 [shape = 'u8[1024]{0}', space=vmem, size = 0x400, scoped, tag = 'input window, operand 2, single buffered']
    #allocation8 [shape = 'u8[393216]{0}', space=vmem, size = 0x60000, scoped, tag = 'input window, operand 3, single buffered']
    #allocation9 [shape = 's32[1]{0}', space=sflag, size = 0x4, scoped, tag = 'scoped memory for tpu_custom_call.1']
    #allocation10 [shape = 'u8[3072]{0}', space=vmem, size = 0xc00, scoped, tag = 'input window, operand 4, single buffered']
    #allocation11 [shape = 'u8[131072]{0}', space=vmem, size = 0x20000, scoped, tag = 'output window, operand 0']
    #allocation12 [shape = 'u8[131072]{0}', space=vmem, size = 0x20000, scoped, tag = 'output window, operand 1']
    #allocation13 [shape = 's32[2]{0}', space=sflag, size = 0x8, scoped, tag = 'scoped memory for tpu_custom_call.1']
    #allocation14 [shape = 'u8[131072]{0}', space=vmem, size = 0x20000, scoped, tag = 'output window, operand 2']
    %13 = vsyncpa [#allocation3], 0
    %s14 = scalar_lea.sflag [#allocation3], 1
    %15 = vsyncpa %s14, 0
    %16 = vsyncpa [#allocation6], 0
    %17 = vsyncpa [#allocation9], 0
    %18 = vsyncpa [#allocation4], 0
    %s19 = scalar_lea.sflag [#allocation4], 1
    %20 = vsyncpa %s19, 0
    %21 = vsyncpa [#allocation13], 0
    %s22 = scalar_lea.sflag [#allocation13], 1
    %23 = vsyncpa %s22, 0
    loop: start=0, step=1, limit=4
    $region2: #{tpu_custom_call.1} parent=1 // loop_pre_header
      _
    $region3: #{tpu_custom_call.1} parent=1 // loop_header
      %s25 = sphi 0, %s29
      %p26 = scmp.ge.s32.totalorder %s25, 4
      %s35 = sphi 0, %s37
      %s38 = sphi 0, %s35
      %s39 = sphi 0, %s38
      %s55 = sphi 0, %s39
      %s59 = sphi 0, %s59
      %s61 = sphi 0, %s59
      %s62 = sphi 0, %s61
      %s76 = sphi 0, %s62
      %s80 = sphi 0, %s80
      %s82 = sphi 0, %s80
      %s83 = sphi 0, %s82
      %s97 = sphi 0, %s83
      %s101 = sphi 0, %s101
      %s103 = sphi 0, %s101
      %s104 = sphi 0, %s103
      %s118 = sphi 0, %s104
      %s122 = sphi 0, %s122
      %s124 = sphi 0, %s122
      %s125 = sphi 0, %s124
      %s139 = sphi 0, %s125
      %s145 = sphi 0, %s147
      %s148 = sphi 0, %s145
      %s149 = sphi 0, %s148
      %s165 = sphi 0, %s149
      %s171 = sphi 0, %s173
      %s174 = sphi 0, %s171
      %s175 = sphi 0, %s174
      %s191 = sphi 0, %s175
      %s197 = sphi 0, %s199
      %s200 = sphi 0, %s197
      %s201 = sphi 0, %s200
      %s217 = sphi 0, %s201
    $region4: #{tpu_custom_call.1} parent=1 // loop_header_branch
      %28 = sbr.rel (%p26) target = $region8
    $region5: #{tpu_custom_call.1} parent=1 // loop_body
      %s30 = ssub.s32 %s25, 1
      %s31 = ssub.s32 %s25, 2
      %s32 = sadd.s32 %s25, 1
      %s33 = ssub.s32 %s25, %s32
      %p34 = scmp.eq.s32.totalorder %s33, 0
      %s36 = sadd.s32 %s35, 1
      %s37 = scalar_select %p34, %s35, %s36
      %p40 = pneg %p34
      %p41 = scmp.eq.s32.totalorder %s25, 1
      %p42 = por %p40, %p41
      %p43 = scmp.ne.s32.totalorder %s35, %s38
      %p44 = scmp.eq.s32.totalorder %s25, 0
      %p45 = por %p43, %p44
      %p46 = scmp.ne.s32.totalorder %s35, %s38
      %p47 = scmp.eq.s32.totalorder %s30, 1
      %p48 = por %p46, %p47
      %p49 = scmp.ne.s32.totalorder %s38, %s39
      %p50 = scmp.eq.s32.totalorder %s30, 0
      %p51 = por %p49, %p50
      %p52 = scmp.ne.s32.totalorder %s38, %s39
      %p53 = scmp.eq.s32.totalorder %s31, 1
      %p54 = por %p52, %p53
      %p56 = scmp.ne.s32.totalorder %s39, %s55
      %p57 = scmp.eq.s32.totalorder %s31, 0
      %p58 = por %p56, %p57
      %s60 = sadd.s32 %s59, 1
      %p63 = scmp.eq.s32.totalorder %s25, 1
      %p64 = scmp.ne.s32.totalorder %s59, %s61
      %p65 = scmp.eq.s32.totalorder %s25, 0
      %p66 = por %p64, %p65
      %p67 = scmp.ne.s32.totalorder %s59, %s61
      %p68 = scmp.eq.s32.totalorder %s30, 1
      %p69 = por %p67, %p68
      %p70 = scmp.ne.s32.totalorder %s61, %s62
      %p71 = scmp.eq.s32.totalorder %s30, 0
      %p72 = por %p70, %p71
      %p73 = scmp.ne.s32.totalorder %s61, %s62
      %p74 = scmp.eq.s32.totalorder %s31, 1
      %p75 = por %p73, %p74
      %p77 = scmp.ne.s32.totalorder %s62, %s76
      %p78 = scmp.eq.s32.totalorder %s31, 0
      %p79 = por %p77, %p78
      %s81 = sadd.s32 %s80, 1
      %p84 = scmp.eq.s32.totalorder %s25, 1
      %p85 = scmp.ne.s32.totalorder %s80, %s82
      %p86 = scmp.eq.s32.totalorder %s25, 0
      %p87 = por %p85, %p86
      %p88 = scmp.ne.s32.totalorder %s80, %s82
      %p89 = scmp.eq.s32.totalorder %s30, 1
      %p90 = por %p88, %p89
      %p91 = scmp.ne.s32.totalorder %s82, %s83
      %p92 = scmp.eq.s32.totalorder %s30, 0
      %p93 = por %p91, %p92
      %p94 = scmp.ne.s32.totalorder %s82, %s83
      %p95 = scmp.eq.s32.totalorder %s31, 1
      %p96 = por %p94, %p95
      %p98 = scmp.ne.s32.totalorder %s83, %s97
      %p99 = scmp.eq.s32.totalorder %s31, 0
      %p100 = por %p98, %p99
      %s102 = sadd.s32 %s101, 1
      %p105 = scmp.eq.s32.totalorder %s25, 1
      %p106 = scmp.ne.s32.totalorder %s101, %s103
      %p107 = scmp.eq.s32.totalorder %s25, 0
      %p108 = por %p106, %p107
      %p109 = scmp.ne.s32.totalorder %s101, %s103
      %p110 = scmp.eq.s32.totalorder %s30, 1
      %p111 = por %p109, %p110
      %p112 = scmp.ne.s32.totalorder %s103, %s104
      %p113 = scmp.eq.s32.totalorder %s30, 0
      %p114 = por %p112, %p113
      %p115 = scmp.ne.s32.totalorder %s103, %s104
      %p116 = scmp.eq.s32.totalorder %s31, 1
      %p117 = por %p115, %p116
      %p119 = scmp.ne.s32.totalorder %s104, %s118
      %p120 = scmp.eq.s32.totalorder %s31, 0
      %p121 = por %p119, %p120
      %s123 = sadd.s32 %s122, 1
      %p126 = scmp.eq.s32.totalorder %s25, 1
      %p127 = scmp.ne.s32.totalorder %s122, %s124
      %p128 = scmp.eq.s32.totalorder %s25, 0
      %p129 = por %p127, %p128
      %p130 = scmp.ne.s32.totalorder %s122, %s124
      %p131 = scmp.eq.s32.totalorder %s30, 1
      %p132 = por %p130, %p131
      %p133 = scmp.ne.s32.totalorder %s124, %s125
      %p134 = scmp.eq.s32.totalorder %s30, 0
      %p135 = por %p133, %p134
      %p136 = scmp.ne.s32.totalorder %s124, %s125
      %p137 = scmp.eq.s32.totalorder %s31, 1
      %p138 = por %p136, %p137
      %p140 = scmp.ne.s32.totalorder %s125, %s139
      %p141 = scmp.eq.s32.totalorder %s31, 0
      %p142 = por %p140, %p141
      %s143 = ssub.s32 %s25, %s32
      %p144 = scmp.eq.s32.totalorder %s143, 0
      %s146 = sadd.s32 %s145, 1
      %s147 = scalar_select %p144, %s145, %s146
      %p150 = pneg %p144
      %p151 = scmp.eq.s32.totalorder %s25, 1
      %p152 = por %p150, %p151
      %p153 = scmp.ne.s32.totalorder %s145, %s148
      %p154 = scmp.eq.s32.totalorder %s25, 0
      %p155 = por %p153, %p154
      %p156 = scmp.ne.s32.totalorder %s145, %s148
      %p157 = scmp.eq.s32.totalorder %s30, 1
      %p158 = por %p156, %p157
      %p159 = scmp.ne.s32.totalorder %s148, %s149
      %p160 = scmp.eq.s32.totalorder %s30, 0
      %p161 = por %p159, %p160
      %p162 = scmp.ne.s32.totalorder %s148, %s149
      %p163 = scmp.eq.s32.totalorder %s31, 1
      %p164 = por %p162, %p163
      %p166 = scmp.ne.s32.totalorder %s149, %s165
      %p167 = scmp.eq.s32.totalorder %s31, 0
      %p168 = por %p166, %p167
      %s169 = ssub.s32 %s25, %s32
      %p170 = scmp.eq.s32.totalorder %s169, 0
      %s172 = sadd.s32 %s171, 1
      %s173 = scalar_select %p170, %s171, %s172
      %p176 = pneg %p170
      %p177 = scmp.eq.s32.totalorder %s25, 1
      %p178 = por %p176, %p177
      %p179 = scmp.ne.s32.totalorder %s171, %s174
      %p180 = scmp.eq.s32.totalorder %s25, 0
      %p181 = por %p179, %p180
      %p182 = scmp.ne.s32.totalorder %s171, %s174
      %p183 = scmp.eq.s32.totalorder %s30, 1
      %p184 = por %p182, %p183
      %p185 = scmp.ne.s32.totalorder %s174, %s175
      %p186 = scmp.eq.s32.totalorder %s30, 0
      %p187 = por %p185, %p186
      %p188 = scmp.ne.s32.totalorder %s174, %s175
      %p189 = scmp.eq.s32.totalorder %s31, 1
      %p190 = por %p188, %p189
      %p192 = scmp.ne.s32.totalorder %s175, %s191
      %p193 = scmp.eq.s32.totalorder %s31, 0
      %p194 = por %p192, %p193
      %s195 = ssub.s32 %s25, %s32
      %p196 = scmp.eq.s32.totalorder %s195, 0
      %s198 = sadd.s32 %s197, 1
      %s199 = scalar_select %p196, %s197, %s198
      %p202 = pneg %p196
      %p203 = scmp.eq.s32.totalorder %s25, 1
      %p204 = por %p202, %p203
      %p205 = scmp.ne.s32.totalorder %s197, %s200
      %p206 = scmp.eq.s32.totalorder %s25, 0
      %p207 = por %p205, %p206
      %p208 = scmp.ne.s32.totalorder %s197, %s200
      %p209 = scmp.eq.s32.totalorder %s30, 1
      %p210 = por %p208, %p209
      %p211 = scmp.ne.s32.totalorder %s200, %s201
      %p212 = scmp.eq.s32.totalorder %s30, 0
      %p213 = por %p211, %p212
      %p214 = scmp.ne.s32.totalorder %s200, %s201
      %p215 = scmp.eq.s32.totalorder %s31, 1
      %p216 = por %p214, %p215
      %p218 = scmp.ne.s32.totalorder %s201, %s217
      %p219 = scmp.eq.s32.totalorder %s31, 0
      %p220 = por %p218, %p219
      %p221 = scmp.le.s32.totalorder 1, %s25
      %p222 = scmp.lt.s32.totalorder %s25, 3
      %p223 = pnand %p221, %p222
      %p224 = pneg %p223
      // Predicated region
      $region9: #{tpu_custom_call.1} parent=5 // pred_check
        _
      $region10: #{tpu_custom_call.1} parent=5 // pred_check_branch
        %226 = sbr.rel (%p223) target = $region12
      $region11: #{tpu_custom_call.1} parent=5 // pred_region
        %s227 = ssub.s32 %s25, 1
        // Predicated region
        $region13: #{tpu_custom_call.1} parent=11 // pred_check
          %p228 = pneg %p72
        $region14: #{tpu_custom_call.1} parent=11 // pred_check_branch
          %230 = sbr.rel (%p228) target = $region16
        $region15: #{tpu_custom_call.1} parent=11 // pred_region
          %232 = vsyncadd [#allocation6], 0
          %s234 = sshll.u32 %s1, 4
          %s235 = int_to_ptr.hbm [resolvable:$true] %s234
          %s236 = sshll.u32 [#allocation5], 4
          %s237 = int_to_ptr.vmem [resolvable:$true] %s236
          %239 = dma.hbm_to_vmem [thread:$0]  %s235, 32, %s237, [#allocation6]
        $region16: #{tpu_custom_call.1} parent=11 // pred_fallthru
          _
        // Predicated region
        $region17: #{tpu_custom_call.1} parent=11 // pred_check
          %p240 = pneg %p93
        $region18: #{tpu_custom_call.1} parent=11 // pred_check_branch
          %242 = sbr.rel (%p240) target = $region20
        $region19: #{tpu_custom_call.1} parent=11 // pred_region
          %244 = vsyncadd [#allocation6], 0
          %s246 = sshll.u32 %s2, 4
          %s247 = int_to_ptr.hbm [resolvable:$true] %s246
          %s248 = sshll.u32 [#allocation7], 4
          %s249 = int_to_ptr.vmem [resolvable:$true] %s248
          %251 = dma.hbm_to_vmem [thread:$0]  %s247, 32, %s249, [#allocation6]
        $region20: #{tpu_custom_call.1} parent=11 // pred_fallthru
          _
        // Predicated region
        $region21: #{tpu_custom_call.1} parent=11 // pred_check
          %p252 = pneg %p114
        $region22: #{tpu_custom_call.1} parent=11 // pred_check_branch
          %254 = sbr.rel (%p252) target = $region24
        $region23: #{tpu_custom_call.1} parent=11 // pred_region
          %256 = vsyncadd [#allocation9], 0
          %s257 = sshll.u32 %s3, 4
          %s258 = int_to_ptr.hbm [resolvable:$true] %s257
          %s259 = sshll.u32 [#allocation8], 4
          %s260 = int_to_ptr.vmem [resolvable:$true] %s259
          %265 = dma.hbm_to_vmem [thread:$0]  %s258, 12288, %s260, [#allocation9], 384, 384, 24
        $region24: #{tpu_custom_call.1} parent=11 // pred_fallthru
          _
        // Predicated region
        $region25: #{tpu_custom_call.1} parent=11 // pred_check
          %p266 = pneg %p135
        $region26: #{tpu_custom_call.1} parent=11 // pred_check_branch
          %268 = sbr.rel (%p266) target = $region28
        $region27: #{tpu_custom_call.1} parent=11 // pred_region
          %270 = vsyncadd [#allocation9], 0
          %s272 = sshll.u32 %s4, 4
          %s273 = int_to_ptr.hbm [resolvable:$true] %s272
          %s274 = sshll.u32 [#allocation10], 4
          %s275 = int_to_ptr.vmem [resolvable:$true] %s274
          %277 = dma.hbm_to_vmem [thread:$0]  %s273, 96, %s275, [#allocation9]
        $region28: #{tpu_custom_call.1} parent=11 // pred_fallthru
          _
      $region12: #{tpu_custom_call.1} parent=5 // pred_fallthru
        _
      %p278 = scmp.lt.s32.totalorder %s25, 2
      // Predicated region
      $region29: #{tpu_custom_call.1} parent=5 // pred_check
        %p279 = pneg %p278
      $region30: #{tpu_custom_call.1} parent=5 // pred_check_branch
        %281 = sbr.rel (%p279) target = $region32
      $region31: #{tpu_custom_call.1} parent=5 // pred_region
        // Predicated region
        $region33: #{tpu_custom_call.1} parent=31 // pred_check
          %p282 = pneg %p45
        $region34: #{tpu_custom_call.1} parent=31 // pred_check_branch
          %284 = sbr.rel (%p282) target = $region36
        $region35: #{tpu_custom_call.1} parent=31 // pred_region
          %s285 = sand.u32 %s35, 1
          %s286 = scalar_lea.sflag [#allocation3], %s285
          %s287 = sand.u32 %s35, 1
          %s288 = smul.addr %s287, 256
          %s289 = scalar_lea.vmem [#allocation2], %s288
          %s290 = smul.u32 16, %s25
          %292 = vsyncadd %s286, 0
          %s293 = smul.addr %s290, 2
          %s294 = smul.addr %s293, 8
          %s295 = scalar_lea.hbm %s0, %s294
          %s296 = sshll.u32 %s295, 4
          %s297 = int_to_ptr.hbm [resolvable:$true] %s296
          %s298 = sshll.u32 %s289, 4
          %s299 = int_to_ptr.vmem [resolvable:$true] %s298
          %304 = dma.hbm_to_vmem [thread:$0]  %s297, 4096, %s299, %s286, 256, 256, 16
        $region36: #{tpu_custom_call.1} parent=31 // pred_fallthru
          _
      $region32: #{tpu_custom_call.1} parent=5 // pred_fallthru
        _
      %p305 = scmp.le.s32.totalorder 1, %s25
      %p306 = scmp.lt.s32.totalorder %s25, 3
      %p307 = pnand %p305, %p306
      %p308 = pneg %p307
      // Predicated region
      $region37: #{tpu_custom_call.1} parent=5 // pred_check
        _
      $region38: #{tpu_custom_call.1} parent=5 // pred_check_branch
        %310 = sbr.rel (%p307) target = $region40
      $region39: #{tpu_custom_call.1} parent=5 // pred_region
        %s311 = ssub.s32 %s25, 1
        %s312 = sand.u32 %s38, 1
        %s313 = scalar_lea.sflag [#allocation3], %s312
        %s314 = sand.u32 %s38, 1
        %s315 = smul.addr %s314, 256
        %s316 = scalar_lea.vmem [#allocation2], %s315
        // Predicated region
        $region41: #{tpu_custom_call.1} parent=39 // pred_check
          %p317 = pneg %p51
        $region42: #{tpu_custom_call.1} parent=39 // pred_check_branch
          %319 = sbr.rel (%p317) target = $region44
        $region43: #{tpu_custom_call.1} parent=39 // pred_region
          %321 = dma.done %s313, 4096
        $region44: #{tpu_custom_call.1} parent=39 // pred_fallthru
          _
        // Predicated region
        $region45: #{tpu_custom_call.1} parent=39 // pred_check
          %p322 = pneg %p72
        $region46: #{tpu_custom_call.1} parent=39 // pred_check_branch
          %324 = sbr.rel (%p322) target = $region48
        $region47: #{tpu_custom_call.1} parent=39 // pred_region
          %326 = dma.done [#allocation6], 32
        $region48: #{tpu_custom_call.1} parent=39 // pred_fallthru
          _
        // Predicated region
        $region49: #{tpu_custom_call.1} parent=39 // pred_check
          %p327 = pneg %p93
        $region50: #{tpu_custom_call.1} parent=39 // pred_check_branch
          %329 = sbr.rel (%p327) target = $region52
        $region51: #{tpu_custom_call.1} parent=39 // pred_region
          %331 = dma.done [#allocation6], 32
        $region52: #{tpu_custom_call.1} parent=39 // pred_fallthru
          _
        // Predicated region
        $region53: #{tpu_custom_call.1} parent=39 // pred_check
          %p332 = pneg %p114
        $region54: #{tpu_custom_call.1} parent=39 // pred_check_branch
          %334 = sbr.rel (%p332) target = $region56
        $region55: #{tpu_custom_call.1} parent=39 // pred_region
          %336 = dma.done [#allocation9], 12288
        $region56: #{tpu_custom_call.1} parent=39 // pred_fallthru
          _
        // Predicated region
        $region57: #{tpu_custom_call.1} parent=39 // pred_check
          %p337 = pneg %p135
        $region58: #{tpu_custom_call.1} parent=39 // pred_check_branch
          %339 = sbr.rel (%p337) target = $region60
        $region59: #{tpu_custom_call.1} parent=39 // pred_region
          %341 = dma.done [#allocation9], 96
        $region60: #{tpu_custom_call.1} parent=39 // pred_fallthru
          _
        %s342 = sand.u32 %s38, 1
        %s343 = scalar_lea.sflag [#allocation3], %s342
        %s344 = sand.u32 %s38, 1
        %s345 = smul.addr %s344, 256
        %s346 = scalar_lea.vmem [#allocation2], %s345
        %p347 = pneg %p51
        %p348 = pneg %p48
        %p349 = pneg %p72
        %p350 = pneg %p69
        %p351 = pneg %p93
        %p352 = pneg %p90
        %p353 = pneg %p114
        %p354 = pneg %p111
        %p355 = pneg %p135
        %p356 = pneg %p132
        %p357 = pneg %p161
        %p358 = pneg %p158
        %s359 = sand.u32 %s148, 1
        %s360 = scalar_lea.sflag [#allocation4], %s359
        %s361 = sand.u32 %s148, 1
        %s362 = smul.addr %s361, 128
        %s363 = scalar_lea.vmem [#allocation11], %s362
        %p364 = pneg %p187
        %p365 = pneg %p184
        %s366 = sand.u32 %s30, 1
        %s367 = scalar_lea.sflag [#allocation13], %s366
        %s368 = sand.u32 %s174, 1
        %s369 = smul.addr %s368, 128
        %s370 = scalar_lea.vmem [#allocation12], %s369
        %p371 = pneg %p213
        %p372 = pneg %p210
        %s373 = sand.u32 %s30, 1
        %s374 = scalar_lea.sflag [#allocation13], %s373
        %s375 = sand.u32 %s200, 1
        %s376 = smul.addr %s375, 128
        %s377 = scalar_lea.vmem [#allocation14], %s376
        %s378 = smul.u32 16, %s30
        %s379 = smul.u32 16, %s30
        %s380 = smul.u32 16, %s30
        %s381 = smul.u32 16, %s30
        %v382 = vld [vmem:[%s316] sm:$0xff]
        %v383 = vld [vmem:[%s316 + $0x8] sm:$0xff]
        %v384 = vld [vmem:[%s316 + $0x10] sm:$0xff]
        %v385 = vld [vmem:[%s316 + $0x18] sm:$0xff]
        %v386 = vld [vmem:[%s316 + $0x20] sm:$0xff]
        %v387 = vld [vmem:[%s316 + $0x28] sm:$0xff]
        %v388 = vld [vmem:[%s316 + $0x30] sm:$0xff]
        %v389 = vld [vmem:[%s316 + $0x38] sm:$0xff]
        %v390 = vld [vmem:[%s316 + $0x40] sm:$0xff]
        %v391 = vld [vmem:[%s316 + $0x48] sm:$0xff]
        %v392 = vld [vmem:[%s316 + $0x50] sm:$0xff]
        %v393 = vld [vmem:[%s316 + $0x58] sm:$0xff]
        %v394 = vld [vmem:[%s316 + $0x60] sm:$0xff]
        %v395 = vld [vmem:[%s316 + $0x68] sm:$0xff]
        %v396 = vld [vmem:[%s316 + $0x70] sm:$0xff]
        %v397 = vld [vmem:[%s316 + $0x78] sm:$0xff]
        %v398 = vld [vmem:[%s316 + $0x80] sm:$0xff]
        %v399 = vld [vmem:[%s316 + $0x88] sm:$0xff]
        %v400 = vld [vmem:[%s316 + $0x90] sm:$0xff]
        %v401 = vld [vmem:[%s316 + $0x98] sm:$0xff]
        %v402 = vld [vmem:[%s316 + $0xa0] sm:$0xff]
        %v403 = vld [vmem:[%s316 + $0xa8] sm:$0xff]
        %v404 = vld [vmem:[%s316 + $0xb0] sm:$0xff]
        %v405 = vld [vmem:[%s316 + $0xb8] sm:$0xff]
        %v406 = vld [vmem:[%s316 + $0xc0] sm:$0xff]
        %v407 = vld [vmem:[%s316 + $0xc8] sm:$0xff]
        %v408 = vld [vmem:[%s316 + $0xd0] sm:$0xff]
        %v409 = vld [vmem:[%s316 + $0xd8] sm:$0xff]
        %v410 = vld [vmem:[%s316 + $0xe0] sm:$0xff]
        %v411 = vld [vmem:[%s316 + $0xe8] sm:$0xff]
        %v412 = vld [vmem:[%s316 + $0xf0] sm:$0xff]
        %v413 = vld [vmem:[%s316 + $0xf8] sm:$0xff]
        %v414 = vld [vmem:[#allocation5] sm:$0x3]
        %v415 = vld [vmem:[#allocation7] sm:$0x3]
        %v416 = vadd.f32 %v382, %v383
        %417 = vadd.xlane.f32.xlu0 %v416
        %v418 = vpop.xlane.xlu0 %417
        %v419 = vadd.f32 %v384, %v385
        %420 = vadd.xlane.f32.xlu0 %v419
        %v421 = vpop.xlane.xlu0 %420
        %v422 = vadd.f32 %v386, %v387
        %423 = vadd.xlane.f32.xlu0 %v422
        %v424 = vpop.xlane.xlu0 %423
        %v425 = vadd.f32 %v388, %v389
        %426 = vadd.xlane.f32.xlu0 %v425
        %v427 = vpop.xlane.xlu0 %426
        %v428 = vadd.f32 %v390, %v391
        %429 = vadd.xlane.f32.xlu0 %v428
        %v430 = vpop.xlane.xlu0 %429
        %v431 = vadd.f32 %v392, %v393
        %432 = vadd.xlane.f32.xlu0 %v431
        %v433 = vpop.xlane.xlu0 %432
        %v434 = vadd.f32 %v394, %v395
        %435 = vadd.xlane.f32.xlu0 %v434
        %v436 = vpop.xlane.xlu0 %435
        %v437 = vadd.f32 %v396, %v397
        %438 = vadd.xlane.f32.xlu0 %v437
        %v439 = vpop.xlane.xlu0 %438
        %v440 = vadd.f32 %v398, %v399
        %441 = vadd.xlane.f32.xlu0 %v440
        %v442 = vpop.xlane.xlu0 %441
        %v443 = vadd.f32 %v400, %v401
        %444 = vadd.xlane.f32.xlu0 %v443
        %v445 = vpop.xlane.xlu0 %444
        %v446 = vadd.f32 %v402, %v403
        %447 = vadd.xlane.f32.xlu0 %v446
        %v448 = vpop.xlane.xlu0 %447
        %v449 = vadd.f32 %v404, %v405
        %450 = vadd.xlane.f32.xlu0 %v449
        %v451 = vpop.xlane.xlu0 %450
        %v452 = vadd.f32 %v406, %v407
        %453 = vadd.xlane.f32.xlu0 %v452
        %v454 = vpop.xlane.xlu0 %453
        %v455 = vadd.f32 %v408, %v409
        %456 = vadd.xlane.f32.xlu0 %v455
        %v457 = vpop.xlane.xlu0 %456
        %v458 = vadd.f32 %v410, %v411
        %459 = vadd.xlane.f32.xlu0 %v458
        %v460 = vpop.xlane.xlu0 %459
        %v461 = vadd.f32 %v412, %v413
        %462 = vadd.xlane.f32.xlu0 %v461
        %v463 = vpop.xlane.xlu0 %462
        %v464 = vrcp.pop 256.0
        %v465 = vmul.f32 256.0, %v464
        %v466 = vsub.f32 1.0, %v465
        %v467 = vmul.f32 %v464, %v466
        %v468 = vadd.f32 %v464, %v467
        %vm469 = vweird.f32 %v464
        %v470 = vsel %vm469, %v464, %v468
        %v471 = vmul.f32 %v418, %v470
        %v472 = vmul.f32 %v421, %v470
        %v473 = vmul.f32 %v424, %v470
        %v474 = vmul.f32 %v427, %v470
        %v475 = vmul.f32 %v430, %v470
        %v476 = vmul.f32 %v433, %v470
        %v477 = vmul.f32 %v436, %v470
        %v478 = vmul.f32 %v439, %v470
        %v479 = vmul.f32 %v442, %v470
        %v480 = vmul.f32 %v445, %v470
        %v481 = vmul.f32 %v448, %v470
        %v482 = vmul.f32 %v451, %v470
        %v483 = vmul.f32 %v454, %v470
        %v484 = vmul.f32 %v457, %v470
        %v485 = vmul.f32 %v460, %v470
        %v486 = vmul.f32 %v463, %v470
        %v487 = vsub.f32 %v382, %v471
        %v488 = vsub.f32 %v383, %v471
        %v489 = vsub.f32 %v384, %v472
        %v490 = vsub.f32 %v385, %v472
        %v491 = vsub.f32 %v386, %v473
        %v492 = vsub.f32 %v387, %v473
        %v493 = vsub.f32 %v388, %v474
        %v494 = vsub.f32 %v389, %v474
        %v495 = vsub.f32 %v390, %v475
        %v496 = vsub.f32 %v391, %v475
        %v497 = vsub.f32 %v392, %v476
        %v498 = vsub.f32 %v393, %v476
        %v499 = vsub.f32 %v394, %v477
        %v500 = vsub.f32 %v395, %v477
        %v501 = vsub.f32 %v396, %v478
        %v502 = vsub.f32 %v397, %v478
        %v503 = vsub.f32 %v398, %v479
        %v504 = vsub.f32 %v399, %v479
        %v505 = vsub.f32 %v400, %v480
        %v506 = vsub.f32 %v401, %v480
        %v507 = vsub.f32 %v402, %v481
        %v508 = vsub.f32 %v403, %v481
        %v509 = vsub.f32 %v404, %v482
        %v510 = vsub.f32 %v405, %v482
        %v511 = vsub.f32 %v406, %v483
        %v512 = vsub.f32 %v407, %v483
        %v513 = vsub.f32 %v408, %v484
        %v514 = vsub.f32 %v409, %v484
        %v515 = vsub.f32 %v410, %v485
        %v516 = vsub.f32 %v411, %v485
        %v517 = vsub.f32 %v412, %v486
        %v518 = vsub.f32 %v413, %v486
        %v519 = vmul.f32 %v487, %v487
        %v520 = vmul.f32 %v488, %v488
        %v521 = vmul.f32 %v489, %v489
        %v522 = vmul.f32 %v490, %v490
        %v523 = vmul.f32 %v491, %v491
        %v524 = vmul.f32 %v492, %v492
        %v525 = vmul.f32 %v493, %v493
        %v526 = vmul.f32 %v494, %v494
        %v527 = vmul.f32 %v495, %v495
        %v528 = vmul.f32 %v496, %v496
        %v529 = vmul.f32 %v497, %v497
        %v530 = vmul.f32 %v498, %v498
        %v531 = vmul.f32 %v499, %v499
        %v532 = vmul.f32 %v500, %v500
        %v533 = vmul.f32 %v501, %v501
        %v534 = vmul.f32 %v502, %v502
        %v535 = vmul.f32 %v503, %v503
        %v536 = vmul.f32 %v504, %v504
        %v537 = vmul.f32 %v505, %v505
        %v538 = vmul.f32 %v506, %v506
        %v539 = vmul.f32 %v507, %v507
        %v540 = vmul.f32 %v508, %v508
        %v541 = vmul.f32 %v509, %v509
        %v542 = vmul.f32 %v510, %v510
        %v543 = vmul.f32 %v511, %v511
        %v544 = vmul.f32 %v512, %v512
        %v545 = vmul.f32 %v513, %v513
        %v546 = vmul.f32 %v514, %v514
        %v547 = vmul.f32 %v515, %v515
        %v548 = vmul.f32 %v516, %v516
        %v549 = vmul.f32 %v517, %v517
        %v550 = vmul.f32 %v518, %v518
        %v551 = vadd.f32 %v519, %v520
        %552 = vadd.xlane.f32.xlu0 %v551
        %v553 = vpop.xlane.xlu0 %552
        %v554 = vadd.f32 %v521, %v522
        %555 = vadd.xlane.f32.xlu0 %v554
        %v556 = vpop.xlane.xlu0 %555
        %v557 = vadd.f32 %v523, %v524
        %558 = vadd.xlane.f32.xlu0 %v557
        %v559 = vpop.xlane.xlu0 %558
        %v560 = vadd.f32 %v525, %v526
        %561 = vadd.xlane.f32.xlu0 %v560
        %v562 = vpop.xlane.xlu0 %561
        %v563 = vadd.f32 %v527, %v528
        %564 = vadd.xlane.f32.xlu0 %v563
        %v565 = vpop.xlane.xlu0 %564
        %v566 = vadd.f32 %v529, %v530
        %567 = vadd.xlane.f32.xlu0 %v566
        %v568 = vpop.xlane.xlu0 %567
        %v569 = vadd.f32 %v531, %v532
        %570 = vadd.xlane.f32.xlu0 %v569
        %v571 = vpop.xlane.xlu0 %570
        %v572 = vadd.f32 %v533, %v534
        %573 = vadd.xlane.f32.xlu0 %v572
        %v574 = vpop.xlane.xlu0 %573
        %v575 = vadd.f32 %v535, %v536
        %576 = vadd.xlane.f32.xlu0 %v575
        %v577 = vpop.xlane.xlu0 %576
        %v578 = vadd.f32 %v537, %v538
        %579 = vadd.xlane.f32.xlu0 %v578
        %v580 = vpop.xlane.xlu0 %579
        %v581 = vadd.f32 %v539, %v540
        %582 = vadd.xlane.f32.xlu0 %v581
        %v583 = vpop.xlane.xlu0 %582
        %v584 = vadd.f32 %v541, %v542
        %585 = vadd.xlane.f32.xlu0 %v584
        %v586 = vpop.xlane.xlu0 %585
        %v587 = vadd.f32 %v543, %v544
        %588 = vadd.xlane.f32.xlu0 %v587
        %v589 = vpop.xlane.xlu0 %588
        %v590 = vadd.f32 %v545, %v546
        %591 = vadd.xlane.f32.xlu0 %v590
        %v592 = vpop.xlane.xlu0 %591
        %v593 = vadd.f32 %v547, %v548
        %594 = vadd.xlane.f32.xlu0 %v593
        %v595 = vpop.xlane.xlu0 %594
        %v596 = vadd.f32 %v549, %v550
        %597 = vadd.xlane.f32.xlu0 %v596
        %v598 = vpop.xlane.xlu0 %597
        %v599 = vmul.f32 %v553, %v470
        %v600 = vmul.f32 %v556, %v470
        %v601 = vmul.f32 %v559, %v470
        %v602 = vmul.f32 %v562, %v470
        %v603 = vmul.f32 %v565, %v470
        %v604 = vmul.f32 %v568, %v470
        %v605 = vmul.f32 %v571, %v470
        %v606 = vmul.f32 %v574, %v470
        %v607 = vmul.f32 %v577, %v470
        %v608 = vmul.f32 %v580, %v470
        %v609 = vmul.f32 %v583, %v470
        %v610 = vmul.f32 %v586, %v470
        %v611 = vmul.f32 %v589, %v470
        %v612 = vmul.f32 %v592, %v470
        %v613 = vmul.f32 %v595, %v470
        %v614 = vmul.f32 %v598, %v470
        %v615 = vadd.f32 %v599, 1e-05
        %v616 = vadd.f32 %v600, 1e-05
        %v617 = vadd.f32 %v601, 1e-05
        %v618 = vadd.f32 %v602, 1e-05
        %v619 = vadd.f32 %v603, 1e-05
        %v620 = vadd.f32 %v604, 1e-05
        %v621 = vadd.f32 %v605, 1e-05
        %v622 = vadd.f32 %v606, 1e-05
        %v623 = vadd.f32 %v607, 1e-05
        %v624 = vadd.f32 %v608, 1e-05
        %v625 = vadd.f32 %v609, 1e-05
        %v626 = vadd.f32 %v610, 1e-05
        %v627 = vadd.f32 %v611, 1e-05
        %v628 = vadd.f32 %v612, 1e-05
        %v629 = vadd.f32 %v613, 1e-05
        %v630 = vadd.f32 %v614, 1e-05
        %v631 = vrsqrt.pop %v615
        %v632 = vmul.f32 %v631, %v615
        %v633 = vmul.f32 %v632, %v631
        %v634 = vmul.f32 0.5, %v633
        %v635 = vsub.f32 1.5, %v634
        %v636 = vmul.f32 %v631, %v635
        %vm637 = vweird.f32 %v615
        %vm638 = vweird.f32 %v631
        %vm639 = vmor %vm637, %vm638
        %v640 = vsel %vm639, %v631, %v636
        %v641 = vrsqrt.pop %v616
        %v642 = vmul.f32 %v641, %v616
        %v643 = vmul.f32 %v642, %v641
        %v644 = vmul.f32 0.5, %v643
        %v645 = vsub.f32 1.5, %v644
        %v646 = vmul.f32 %v641, %v645
        %vm647 = vweird.f32 %v616
        %vm648 = vweird.f32 %v641
        %vm649 = vmor %vm647, %vm648
        %v650 = vsel %vm649, %v641, %v646
        %v651 = vrsqrt.pop %v617
        %v652 = vmul.f32 %v651, %v617
        %v653 = vmul.f32 %v652, %v651
        %v654 = vmul.f32 0.5, %v653
        %v655 = vsub.f32 1.5, %v654
        %v656 = vmul.f32 %v651, %v655
        %vm657 = vweird.f32 %v617
        %vm658 = vweird.f32 %v651
        %vm659 = vmor %vm657, %vm658
        %v660 = vsel %vm659, %v651, %v656
        %v661 = vrsqrt.pop %v618
        %v662 = vmul.f32 %v661, %v618
        %v663 = vmul.f32 %v662, %v661
        %v664 = vmul.f32 0.5, %v663
        %v665 = vsub.f32 1.5, %v664
        %v666 = vmul.f32 %v661, %v665
        %vm667 = vweird.f32 %v618
        %vm668 = vweird.f32 %v661
        %vm669 = vmor %vm667, %vm668
        %v670 = vsel %vm669, %v661, %v666
        %v671 = vrsqrt.pop %v619
        %v672 = vmul.f32 %v671, %v619
        %v673 = vmul.f32 %v672, %v671
        %v674 = vmul.f32 0.5, %v673
        %v675 = vsub.f32 1.5, %v674
        %v676 = vmul.f32 %v671, %v675
        %vm677 = vweird.f32 %v619
        %vm678 = vweird.f32 %v671
        %vm679 = vmor %vm677, %vm678
        %v680 = vsel %vm679, %v671, %v676
        %v681 = vrsqrt.pop %v620
        %v682 = vmul.f32 %v681, %v620
        %v683 = vmul.f32 %v682, %v681
        %v684 = vmul.f32 0.5, %v683
        %v685 = vsub.f32 1.5, %v684
        %v686 = vmul.f32 %v681, %v685
        %vm687 = vweird.f32 %v620
        %vm688 = vweird.f32 %v681
        %vm689 = vmor %vm687, %vm688
        %v690 = vsel %vm689, %v681, %v686
        %v691 = vrsqrt.pop %v621
        %v692 = vmul.f32 %v691, %v621
        %v693 = vmul.f32 %v692, %v691
        %v694 = vmul.f32 0.5, %v693
        %v695 = vsub.f32 1.5, %v694
        %v696 = vmul.f32 %v691, %v695
        %vm697 = vweird.f32 %v621
        %vm698 = vweird.f32 %v691
        %vm699 = vmor %vm697, %vm698
        %v700 = vsel %vm699, %v691, %v696
        %v701 = vrsqrt.pop %v622
        %v702 = vmul.f32 %v701, %v622
        %v703 = vmul.f32 %v702, %v701
        %v704 = vmul.f32 0.5, %v703
        %v705 = vsub.f32 1.5, %v704
        %v706 = vmul.f32 %v701, %v705
        %vm707 = vweird.f32 %v622
        %vm708 = vweird.f32 %v701
        %vm709 = vmor %vm707, %vm708
        %v710 = vsel %vm709, %v701, %v706
        %v711 = vrsqrt.pop %v623
        %v712 = vmul.f32 %v711, %v623
        %v713 = vmul.f32 %v712, %v711
        %v714 = vmul.f32 0.5, %v713
        %v715 = vsub.f32 1.5, %v714
        %v716 = vmul.f32 %v711, %v715
        %vm717 = vweird.f32 %v623
        %vm718 = vweird.f32 %v711
        %vm719 = vmor %vm717, %vm718
        %v720 = vsel %vm719, %v711, %v716
        %v721 = vrsqrt.pop %v624
        %v722 = vmul.f32 %v721, %v624
        %v723 = vmul.f32 %v722, %v721
        %v724 = vmul.f32 0.5, %v723
        %v725 = vsub.f32 1.5, %v724
        %v726 = vmul.f32 %v721, %v725
        %vm727 = vweird.f32 %v624
        %vm728 = vweird.f32 %v721
        %vm729 = vmor %vm727, %vm728
        %v730 = vsel %vm729, %v721, %v726
        %v731 = vrsqrt.pop %v625
        %v732 = vmul.f32 %v731, %v625
        %v733 = vmul.f32 %v732, %v731
        %v734 = vmul.f32 0.5, %v733
        %v735 = vsub.f32 1.5, %v734
        %v736 = vmul.f32 %v731, %v735
        %vm737 = vweird.f32 %v625
        %vm738 = vweird.f32 %v731
        %vm739 = vmor %vm737, %vm738
        %v740 = vsel %vm739, %v731, %v736
        %v741 = vrsqrt.pop %v626
        %v742 = vmul.f32 %v741, %v626
        %v743 = vmul.f32 %v742, %v741
        %v744 = vmul.f32 0.5, %v743
        %v745 = vsub.f32 1.5, %v744
        %v746 = vmul.f32 %v741, %v745
        %vm747 = vweird.f32 %v626
        %vm748 = vweird.f32 %v741
        %vm749 = vmor %vm747, %vm748
        %v750 = vsel %vm749, %v741, %v746
        %v751 = vrsqrt.pop %v627
        %v752 = vmul.f32 %v751, %v627
        %v753 = vmul.f32 %v752, %v751
        %v754 = vmul.f32 0.5, %v753
        %v755 = vsub.f32 1.5, %v754
        %v756 = vmul.f32 %v751, %v755
        %vm757 = vweird.f32 %v627
        %vm758 = vweird.f32 %v751
        %vm759 = vmor %vm757, %vm758
        %v760 = vsel %vm759, %v751, %v756
        %v761 = vrsqrt.pop %v628
        %v762 = vmul.f32 %v761, %v628
        %v763 = vmul.f32 %v762, %v761
        %v764 = vmul.f32 0.5, %v763
        %v765 = vsub.f32 1.5, %v764
        %v766 = vmul.f32 %v761, %v765
        %vm767 = vweird.f32 %v628
        %vm768 = vweird.f32 %v761
        %vm769 = vmor %vm767, %vm768
        %v770 = vsel %vm769, %v761, %v766
        %v771 = vrsqrt.pop %v629
        %v772 = vmul.f32 %v771, %v629
        %v773 = vmul.f32 %v772, %v771
        %v774 = vmul.f32 0.5, %v773
        %v775 = vsub.f32 1.5, %v774
        %v776 = vmul.f32 %v771, %v775
        %vm777 = vweird.f32 %v629
        %vm778 = vweird.f32 %v771
        %vm779 = vmor %vm777, %vm778
        %v780 = vsel %vm779, %v771, %v776
        %v781 = vrsqrt.pop %v630
        %v782 = vmul.f32 %v781, %v630
        %v783 = vmul.f32 %v782, %v781
        %v784 = vmul.f32 0.5, %v783
        %v785 = vsub.f32 1.5, %v784
        %v786 = vmul.f32 %v781, %v785
        %vm787 = vweird.f32 %v630
        %vm788 = vweird.f32 %v781
        %vm789 = vmor %vm787, %vm788
        %v790 = vsel %vm789, %v781, %v786
        %v791 = vmul.f32 %v487, %v640
        %v792 = vmul.f32 %v488, %v640
        %v793 = vmul.f32 %v489, %v650
        %v794 = vmul.f32 %v490, %v650
        %v795 = vmul.f32 %v491, %v660
        %v796 = vmul.f32 %v492, %v660
        %v797 = vmul.f32 %v493, %v670
        %v798 = vmul.f32 %v494, %v670
        %v799 = vmul.f32 %v495, %v680
        %v800 = vmul.f32 %v496, %v680
        %v801 = vmul.f32 %v497, %v690
        %v802 = vmul.f32 %v498, %v690
        %v803 = vmul.f32 %v499, %v700
        %v804 = vmul.f32 %v500, %v700
        %v805 = vmul.f32 %v501, %v710
        %v806 = vmul.f32 %v502, %v710
        %v807 = vmul.f32 %v503, %v720
        %v808 = vmul.f32 %v504, %v720
        %v809 = vmul.f32 %v505, %v730
        %v810 = vmul.f32 %v506, %v730
        %v811 = vmul.f32 %v507, %v740
        %v812 = vmul.f32 %v508, %v740
        %v813 = vmul.f32 %v509, %v750
        %v814 = vmul.f32 %v510, %v750
        %v815 = vmul.f32 %v511, %v760
        %v816 = vmul.f32 %v512, %v760
        %v817 = vmul.f32 %v513, %v770
        %v818 = vmul.f32 %v514, %v770
        %v819 = vmul.f32 %v515, %v780
        %v820 = vmul.f32 %v516, %v780
        %v821 = vmul.f32 %v517, %v790
        %v822 = vmul.f32 %v518, %v790
        %v824 = vperm.slane %v414, 0
        %v825 = vperm.slane %v414, 1
        %v828 = vmul.f32 %v791, %v824
        %v829 = vmul.f32 %v792, %v825
        %v830 = vmul.f32 %v793, %v824
        %v831 = vmul.f32 %v794, %v825
        %v832 = vmul.f32 %v795, %v824
        %v833 = vmul.f32 %v796, %v825
        %v834 = vmul.f32 %v797, %v824
        %v835 = vmul.f32 %v798, %v825
        %v836 = vmul.f32 %v799, %v824
        %v837 = vmul.f32 %v800, %v825
        %v838 = vmul.f32 %v801, %v824
        %v839 = vmul.f32 %v802, %v825
        %v840 = vmul.f32 %v803, %v824
        %v841 = vmul.f32 %v804, %v825
        %v842 = vmul.f32 %v805, %v824
        %v843 = vmul.f32 %v806, %v825
        %v844 = vmul.f32 %v807, %v824
        %v845 = vmul.f32 %v808, %v825
        %v846 = vmul.f32 %v809, %v824
        %v847 = vmul.f32 %v810, %v825
        %v848 = vmul.f32 %v811, %v824
        %v849 = vmul.f32 %v812, %v825
        %v850 = vmul.f32 %v813, %v824
        %v851 = vmul.f32 %v814, %v825
        %v852 = vmul.f32 %v815, %v824
        %v853 = vmul.f32 %v816, %v825
        %v854 = vmul.f32 %v817, %v824
        %v855 = vmul.f32 %v818, %v825
        %v856 = vmul.f32 %v819, %v824
        %v857 = vmul.f32 %v820, %v825
        %v858 = vmul.f32 %v821, %v824
        %v859 = vmul.f32 %v822, %v825
        %v861 = vperm.slane %v415, 0
        %v862 = vperm.slane %v415, 1
        %v865 = vadd.f32 %v828, %v861
        %v866 = vadd.f32 %v829, %v862
        %v867 = vadd.f32 %v830, %v861
        %v868 = vadd.f32 %v831, %v862
        %v869 = vadd.f32 %v832, %v861
        %v870 = vadd.f32 %v833, %v862
        %v871 = vadd.f32 %v834, %v861
        %v872 = vadd.f32 %v835, %v862
        %v873 = vadd.f32 %v836, %v861
        %v874 = vadd.f32 %v837, %v862
        %v875 = vadd.f32 %v838, %v861
        %v876 = vadd.f32 %v839, %v862
        %v877 = vadd.f32 %v840, %v861
        %v878 = vadd.f32 %v841, %v862
        %v879 = vadd.f32 %v842, %v861
        %v880 = vadd.f32 %v843, %v862
        %v881 = vadd.f32 %v844, %v861
        %v882 = vadd.f32 %v845, %v862
        %v883 = vadd.f32 %v846, %v861
        %v884 = vadd.f32 %v847, %v862
        %v885 = vadd.f32 %v848, %v861
        %v886 = vadd.f32 %v849, %v862
        %v887 = vadd.f32 %v850, %v861
        %v888 = vadd.f32 %v851, %v862
        %v889 = vadd.f32 %v852, %v861
        %v890 = vadd.f32 %v853, %v862
        %v891 = vadd.f32 %v854, %v861
        %v892 = vadd.f32 %v855, %v862
        %v893 = vadd.f32 %v856, %v861
        %v894 = vadd.f32 %v857, %v862
        %v895 = vadd.f32 %v858, %v861
        %v896 = vadd.f32 %v859, %v862
        %v897 = vpack.c.bf16 %v867, %v865
        %v898 = vpack.c.bf16 %v868, %v866
        %v899 = vpack.c.bf16 %v871, %v869
        %v900 = vpack.c.bf16 %v872, %v870
        %v901 = vpack.c.bf16 %v875, %v873
        %v902 = vpack.c.bf16 %v876, %v874
        %v903 = vpack.c.bf16 %v879, %v877
        %v904 = vpack.c.bf16 %v880, %v878
        %v905 = vpack.c.bf16 %v883, %v881
        %v906 = vpack.c.bf16 %v884, %v882
        %v907 = vpack.c.bf16 %v887, %v885
        %v908 = vpack.c.bf16 %v888, %v886
        %v909 = vpack.c.bf16 %v891, %v889
        %v910 = vpack.c.bf16 %v892, %v890
        %v911 = vpack.c.bf16 %v895, %v893
        %v912 = vpack.c.bf16 %v896, %v894
        %v913 = vld [vmem:[#allocation8] sm:$0xff]
        %v914 = vld [vmem:[#allocation8 + $0x8] sm:$0xff]
        %v915 = vld [vmem:[#allocation8 + $0x10] sm:$0xff]
        %v916 = vld [vmem:[#allocation8 + $0x18] sm:$0xff]
        %v917 = vld [vmem:[#allocation8 + $0x20] sm:$0xff]
        %v918 = vld [vmem:[#allocation8 + $0x28] sm:$0xff]
        %v919 = vld [vmem:[#allocation8 + $0x30] sm:$0xff]
        %v920 = vld [vmem:[#allocation8 + $0x38] sm:$0xff]
        %v921 = vld [vmem:[#allocation8 + $0x40] sm:$0xff]
        %v922 = vld [vmem:[#allocation8 + $0x48] sm:$0xff]
        %v923 = vld [vmem:[#allocation8 + $0x50] sm:$0xff]
        %v924 = vld [vmem:[#allocation8 + $0x58] sm:$0xff]
        %v925 = vld [vmem:[#allocation8 + $0x60] sm:$0xff]
        %v926 = vld [vmem:[#allocation8 + $0x68] sm:$0xff]
        %v927 = vld [vmem:[#allocation8 + $0x70] sm:$0xff]
        %v928 = vld [vmem:[#allocation8 + $0x78] sm:$0xff]
        %v929 = vld [vmem:[#allocation8 + $0x80] sm:$0xff]
        %v930 = vld [vmem:[#allocation8 + $0x88] sm:$0xff]
        %v931 = vld [vmem:[#allocation8 + $0x90] sm:$0xff]
        %v932 = vld [vmem:[#allocation8 + $0x98] sm:$0xff]
        %v933 = vld [vmem:[#allocation8 + $0xa0] sm:$0xff]
        %v934 = vld [vmem:[#allocation8 + $0xa8] sm:$0xff]
        %v935 = vld [vmem:[#allocation8 + $0xb0] sm:$0xff]
        %v936 = vld [vmem:[#allocation8 + $0xb8] sm:$0xff]
        %v937 = vld [vmem:[#allocation8 + $0xc0] sm:$0xff]
        %v938 = vld [vmem:[#allocation8 + $0xc8] sm:$0xff]
        %v939 = vld [vmem:[#allocation8 + $0xd0] sm:$0xff]
        %v940 = vld [vmem:[#allocation8 + $0xd8] sm:$0xff]
        %v941 = vld [vmem:[#allocation8 + $0xe0] sm:$0xff]
        %v942 = vld [vmem:[#allocation8 + $0xe8] sm:$0xff]
        %v943 = vld [vmem:[#allocation8 + $0xf0] sm:$0xff]
        %v944 = vld [vmem:[#allocation8 + $0xf8] sm:$0xff]
        %v945 = vld [vmem:[#allocation8 + $0x100] sm:$0xff]
        %v946 = vld [vmem:[#allocation8 + $0x108] sm:$0xff]
        %v947 = vld [vmem:[#allocation8 + $0x110] sm:$0xff]
        %v948 = vld [vmem:[#allocation8 + $0x118] sm:$0xff]
        %v949 = vld [vmem:[#allocation8 + $0x120] sm:$0xff]
        %v950 = vld [vmem:[#allocation8 + $0x128] sm:$0xff]
        %v951 = vld [vmem:[#allocation8 + $0x130] sm:$0xff]
        %v952 = vld [vmem:[#allocation8 + $0x138] sm:$0xff]
        %v953 = vld [vmem:[#allocation8 + $0x140] sm:$0xff]
        %v954 = vld [vmem:[#allocation8 + $0x148] sm:$0xff]
        %v955 = vld [vmem:[#allocation8 + $0x150] sm:$0xff]
        %v956 = vld [vmem:[#allocation8 + $0x158] sm:$0xff]
        %v957 = vld [vmem:[#allocation8 + $0x160] sm:$0xff]
        %v958 = vld [vmem:[#allocation8 + $0x168] sm:$0xff]
        %v959 = vld [vmem:[#allocation8 + $0x170] sm:$0xff]
        %v960 = vld [vmem:[#allocation8 + $0x178] sm:$0xff]
        %v961 = vld [vmem:[#allocation8 + $0x180] sm:$0xff]
        %v962 = vld [vmem:[#allocation8 + $0x188] sm:$0xff]
        %v963 = vld [vmem:[#allocation8 + $0x190] sm:$0xff]
        %v964 = vld [vmem:[#allocation8 + $0x198] sm:$0xff]
        %v965 = vld [vmem:[#allocation8 + $0x1a0] sm:$0xff]
        %v966 = vld [vmem:[#allocation8 + $0x1a8] sm:$0xff]
        %v967 = vld [vmem:[#allocation8 + $0x1b0] sm:$0xff]
        %v968 = vld [vmem:[#allocation8 + $0x1b8] sm:$0xff]
        %v969 = vld [vmem:[#allocation8 + $0x1c0] sm:$0xff]
        %v970 = vld [vmem:[#allocation8 + $0x1c8] sm:$0xff]
        %v971 = vld [vmem:[#allocation8 + $0x1d0] sm:$0xff]
        %v972 = vld [vmem:[#allocation8 + $0x1d8] sm:$0xff]
        %v973 = vld [vmem:[#allocation8 + $0x1e0] sm:$0xff]
        %v974 = vld [vmem:[#allocation8 + $0x1e8] sm:$0xff]
        %v975 = vld [vmem:[#allocation8 + $0x1f0] sm:$0xff]
        %v976 = vld [vmem:[#allocation8 + $0x1f8] sm:$0xff]
        %v977 = vld [vmem:[#allocation8 + $0x200] sm:$0xff]
        %v978 = vld [vmem:[#allocation8 + $0x208] sm:$0xff]
        %v979 = vld [vmem:[#allocation8 + $0x210] sm:$0xff]
        %v980 = vld [vmem:[#allocation8 + $0x218] sm:$0xff]
        %v981 = vld [vmem:[#allocation8 + $0x220] sm:$0xff]
        %v982 = vld [vmem:[#allocation8 + $0x228] sm:$0xff]
        %v983 = vld [vmem:[#allocation8 + $0x230] sm:$0xff]
        %v984 = vld [vmem:[#allocation8 + $0x238] sm:$0xff]
        %v985 = vld [vmem:[#allocation8 + $0x240] sm:$0xff]
        %v986 = vld [vmem:[#allocation8 + $0x248] sm:$0xff]
        %v987 = vld [vmem:[#allocation8 + $0x250] sm:$0xff]
        %v988 = vld [vmem:[#allocation8 + $0x258] sm:$0xff]
        %v989 = vld [vmem:[#allocation8 + $0x260] sm:$0xff]
        %v990 = vld [vmem:[#allocation8 + $0x268] sm:$0xff]
        %v991 = vld [vmem:[#allocation8 + $0x270] sm:$0xff]
        %v992 = vld [vmem:[#allocation8 + $0x278] sm:$0xff]
        %v993 = vld [vmem:[#allocation8 + $0x280] sm:$0xff]
        %v994 = vld [vmem:[#allocation8 + $0x288] sm:$0xff]
        %v995 = vld [vmem:[#allocation8 + $0x290] sm:$0xff]
        %v996 = vld [vmem:[#allocation8 + $0x298] sm:$0xff]
        %v997 = vld [vmem:[#allocation8 + $0x2a0] sm:$0xff]
        %v998 = vld [vmem:[#allocation8 + $0x2a8] sm:$0xff]
        %v999 = vld [vmem:[#allocation8 + $0x2b0] sm:$0xff]
        %v1000 = vld [vmem:[#allocation8 + $0x2b8] sm:$0xff]
        %v1001 = vld [vmem:[#allocation8 + $0x2c0] sm:$0xff]
        %v1002 = vld [vmem:[#allocation8 + $0x2c8] sm:$0xff]
        %v1003 = vld [vmem:[#allocation8 + $0x2d0] sm:$0xff]
        %v1004 = vld [vmem:[#allocation8 + $0x2d8] sm:$0xff]
        %v1005 = vld [vmem:[#allocation8 + $0x2e0] sm:$0xff]
        %v1006 = vld [vmem:[#allocation8 + $0x2e8] sm:$0xff]
        %v1007 = vld [vmem:[#allocation8 + $0x2f0] sm:$0xff]
        %v1008 = vld [vmem:[#allocation8 + $0x2f8] sm:$0xff]
        %v1009 = vld [vmem:[#allocation10] sm:$0x3f]
        %v1011 = vperm.slane %v1009, 0
        %v1012 = vperm.slane %v1009, 1
        %v1013 = vperm.slane %v1009, 2
        %v1014 = vperm.slane %v1009, 3
        %v1015 = vperm.slane %v1009, 4
        %v1016 = vperm.slane %v1009, 5
        %v1119 = vunpack.c.l.b16 %v913
        %v1120 = vunpack.c.h.b16 %v913
        %v1121 = vunpack.c.l.b16 %v914
        %v1122 = vunpack.c.h.b16 %v914
        %v1123 = vunpack.c.l.b16 %v915
        %v1124 = vunpack.c.h.b16 %v915
        %v1125 = vunpack.c.l.b16 %v916
        %v1126 = vunpack.c.h.b16 %v916
        %v1127 = vunpack.c.l.b16 %v917
        %v1128 = vunpack.c.h.b16 %v917
        %v1129 = vunpack.c.l.b16 %v918
        %v1130 = vunpack.c.h.b16 %v918
        %v1131 = vunpack.c.l.b16 %v919
        %v1132 = vunpack.c.h.b16 %v919
        %v1133 = vunpack.c.l.b16 %v920
        %v1134 = vunpack.c.h.b16 %v920
        %v1135 = vunpack.c.l.b16 %v921
        %v1136 = vunpack.c.h.b16 %v921
        %v1137 = vunpack.c.l.b16 %v922
        %v1138 = vunpack.c.h.b16 %v922
        %v1139 = vunpack.c.l.b16 %v923
        %v1140 = vunpack.c.h.b16 %v923
        %v1141 = vunpack.c.l.b16 %v924
        %v1142 = vunpack.c.h.b16 %v924
        %v1143 = vunpack.c.l.b16 %v925
        %v1144 = vunpack.c.h.b16 %v925
        %v1145 = vunpack.c.l.b16 %v926
        %v1146 = vunpack.c.h.b16 %v926
        %v1147 = vunpack.c.l.b16 %v927
        %v1148 = vunpack.c.h.b16 %v927
        %v1149 = vunpack.c.l.b16 %v928
        %v1150 = vunpack.c.h.b16 %v928
        %v1151 = vunpack.c.l.b16 %v929
        %v1152 = vunpack.c.h.b16 %v929
        %v1153 = vunpack.c.l.b16 %v930
        %v1154 = vunpack.c.h.b16 %v930
        %v1155 = vunpack.c.l.b16 %v931
        %v1156 = vunpack.c.h.b16 %v931
        %v1157 = vunpack.c.l.b16 %v932
        %v1158 = vunpack.c.h.b16 %v932
        %v1159 = vunpack.c.l.b16 %v933
        %v1160 = vunpack.c.h.b16 %v933
        %v1161 = vunpack.c.l.b16 %v934
        %v1162 = vunpack.c.h.b16 %v934
        %v1163 = vunpack.c.l.b16 %v935
        %v1164 = vunpack.c.h.b16 %v935
        %v1165 = vunpack.c.l.b16 %v936
        %v1166 = vunpack.c.h.b16 %v936
        %v1167 = vunpack.c.l.b16 %v937
        %v1168 = vunpack.c.h.b16 %v937
        %v1169 = vunpack.c.l.b16 %v938
        %v1170 = vunpack.c.h.b16 %v938
        %v1171 = vunpack.c.l.b16 %v939
        %v1172 = vunpack.c.h.b16 %v939
        %v1173 = vunpack.c.l.b16 %v940
        %v1174 = vunpack.c.h.b16 %v940
        %v1175 = vunpack.c.l.b16 %v941
        %v1176 = vunpack.c.h.b16 %v941
        %v1177 = vunpack.c.l.b16 %v942
        %v1178 = vunpack.c.h.b16 %v942
        %v1179 = vunpack.c.l.b16 %v943
        %v1180 = vunpack.c.h.b16 %v943
        %v1181 = vunpack.c.l.b16 %v944
        %v1182 = vunpack.c.h.b16 %v944
        %v1183 = vunpack.c.l.b16 %v945
        %v1184 = vunpack.c.h.b16 %v945
        %v1185 = vunpack.c.l.b16 %v946
        %v1186 = vunpack.c.h.b16 %v946
        %v1187 = vunpack.c.l.b16 %v947
        %v1188 = vunpack.c.h.b16 %v947
        %v1189 = vunpack.c.l.b16 %v948
        %v1190 = vunpack.c.h.b16 %v948
        %v1191 = vunpack.c.l.b16 %v949
        %v1192 = vunpack.c.h.b16 %v949
        %v1193 = vunpack.c.l.b16 %v950
        %v1194 = vunpack.c.h.b16 %v950
        %v1195 = vunpack.c.l.b16 %v951
        %v1196 = vunpack.c.h.b16 %v951
        %v1197 = vunpack.c.l.b16 %v952
        %v1198 = vunpack.c.h.b16 %v952
        %v1199 = vunpack.c.l.b16 %v953
        %v1200 = vunpack.c.h.b16 %v953
        %v1201 = vunpack.c.l.b16 %v954
        %v1202 = vunpack.c.h.b16 %v954
        %v1203 = vunpack.c.l.b16 %v955
        %v1204 = vunpack.c.h.b16 %v955
        %v1205 = vunpack.c.l.b16 %v956
        %v1206 = vunpack.c.h.b16 %v956
        %v1207 = vunpack.c.l.b16 %v957
        %v1208 = vunpack.c.h.b16 %v957
        %v1209 = vunpack.c.l.b16 %v958
        %v1210 = vunpack.c.h.b16 %v958
        %v1211 = vunpack.c.l.b16 %v959
        %v1212 = vunpack.c.h.b16 %v959
        %v1213 = vunpack.c.l.b16 %v960
        %v1214 = vunpack.c.h.b16 %v960
        %v1215 = vunpack.c.l.b16 %v961
        %v1216 = vunpack.c.h.b16 %v961
        %v1217 = vunpack.c.l.b16 %v962
        %v1218 = vunpack.c.h.b16 %v962
        %v1219 = vunpack.c.l.b16 %v963
        %v1220 = vunpack.c.h.b16 %v963
        %v1221 = vunpack.c.l.b16 %v964
        %v1222 = vunpack.c.h.b16 %v964
        %v1223 = vunpack.c.l.b16 %v965
        %v1224 = vunpack.c.h.b16 %v965
        %v1225 = vunpack.c.l.b16 %v966
        %v1226 = vunpack.c.h.b16 %v966
        %v1227 = vunpack.c.l.b16 %v967
        %v1228 = vunpack.c.h.b16 %v967
        %v1229 = vunpack.c.l.b16 %v968
        %v1230 = vunpack.c.h.b16 %v968
        %v1231 = vunpack.c.l.b16 %v969
        %v1232 = vunpack.c.h.b16 %v969
        %v1233 = vunpack.c.l.b16 %v970
        %v1234 = vunpack.c.h.b16 %v970
        %v1235 = vunpack.c.l.b16 %v971
        %v1236 = vunpack.c.h.b16 %v971
        %v1237 = vunpack.c.l.b16 %v972
        %v1238 = vunpack.c.h.b16 %v972
        %v1239 = vunpack.c.l.b16 %v973
        %v1240 = vunpack.c.h.b16 %v973
        %v1241 = vunpack.c.l.b16 %v974
        %v1242 = vunpack.c.h.b16 %v974
        %v1243 = vunpack.c.l.b16 %v975
        %v1244 = vunpack.c.h.b16 %v975
        %v1245 = vunpack.c.l.b16 %v976
        %v1246 = vunpack.c.h.b16 %v976
        %v1247 = vunpack.c.l.b16 %v977
        %v1248 = vunpack.c.h.b16 %v977
        %v1249 = vunpack.c.l.b16 %v978
        %v1250 = vunpack.c.h.b16 %v978
        %v1251 = vunpack.c.l.b16 %v979
        %v1252 = vunpack.c.h.b16 %v979
        %v1253 = vunpack.c.l.b16 %v980
        %v1254 = vunpack.c.h.b16 %v980
        %v1255 = vunpack.c.l.b16 %v981
        %v1256 = vunpack.c.h.b16 %v981
        %v1257 = vunpack.c.l.b16 %v982
        %v1258 = vunpack.c.h.b16 %v982
        %v1259 = vunpack.c.l.b16 %v983
        %v1260 = vunpack.c.h.b16 %v983
        %v1261 = vunpack.c.l.b16 %v984
        %v1262 = vunpack.c.h.b16 %v984
        %v1263 = vunpack.c.l.b16 %v985
        %v1264 = vunpack.c.h.b16 %v985
        %v1265 = vunpack.c.l.b16 %v986
        %v1266 = vunpack.c.h.b16 %v986
        %v1267 = vunpack.c.l.b16 %v987
        %v1268 = vunpack.c.h.b16 %v987
        %v1269 = vunpack.c.l.b16 %v988
        %v1270 = vunpack.c.h.b16 %v988
        %v1271 = vunpack.c.l.b16 %v989
        %v1272 = vunpack.c.h.b16 %v989
        %v1273 = vunpack.c.l.b16 %v990
        %v1274 = vunpack.c.h.b16 %v990
        %v1275 = vunpack.c.l.b16 %v991
        %v1276 = vunpack.c.h.b16 %v991
        %v1277 = vunpack.c.l.b16 %v992
        %v1278 = vunpack.c.h.b16 %v992
        %v1279 = vunpack.c.l.b16 %v993
        %v1280 = vunpack.c.h.b16 %v993
        %v1281 = vunpack.c.l.b16 %v994
        %v1282 = vunpack.c.h.b16 %v994
        %v1283 = vunpack.c.l.b16 %v995
        %v1284 = vunpack.c.h.b16 %v995
        %v1285 = vunpack.c.l.b16 %v996
        %v1286 = vunpack.c.h.b16 %v996
        %v1287 = vunpack.c.l.b16 %v997
        %v1288 = vunpack.c.h.b16 %v997
        %v1289 = vunpack.c.l.b16 %v998
        %v1290 = vunpack.c.h.b16 %v998
        %v1291 = vunpack.c.l.b16 %v999
        %v1292 = vunpack.c.h.b16 %v999
        %v1293 = vunpack.c.l.b16 %v1000
        %v1294 = vunpack.c.h.b16 %v1000
        %v1295 = vunpack.c.l.b16 %v1001
        %v1296 = vunpack.c.h.b16 %v1001
        %v1297 = vunpack.c.l.b16 %v1002
        %v1298 = vunpack.c.h.b16 %v1002
        %v1299 = vunpack.c.l.b16 %v1003
        %v1300 = vunpack.c.h.b16 %v1003
        %v1301 = vunpack.c.l.b16 %v1004
        %v1302 = vunpack.c.h.b16 %v1004
        %v1303 = vunpack.c.l.b16 %v1005
        %v1304 = vunpack.c.h.b16 %v1005
        %v1305 = vunpack.c.l.b16 %v1006
        %v1306 = vunpack.c.h.b16 %v1006
        %v1307 = vunpack.c.l.b16 %v1007
        %v1308 = vunpack.c.h.b16 %v1007
        %v1309 = vunpack.c.l.b16 %v1008
        %v1310 = vunpack.c.h.b16 %v1008
        %v1311 = vpack.c.b16 %v1125, %v1119
        %v1312 = vpack.c.b16 %v1126, %v1120
        %v1313 = vpack.c.b16 %v1127, %v1121
        %v1314 = vpack.c.b16 %v1128, %v1122
        %v1315 = vpack.c.b16 %v1129, %v1123
        %v1316 = vpack.c.b16 %v1130, %v1124
        %v1317 = vpack.c.b16 %v1137, %v1131
        %v1318 = vpack.c.b16 %v1138, %v1132
        %v1319 = vpack.c.b16 %v1139, %v1133
        %v1320 = vpack.c.b16 %v1140, %v1134
        %v1321 = vpack.c.b16 %v1141, %v1135
        %v1322 = vpack.c.b16 %v1142, %v1136
        %v1323 = vpack.c.b16 %v1149, %v1143
        %v1324 = vpack.c.b16 %v1150, %v1144
        %v1325 = vpack.c.b16 %v1151, %v1145
        %v1326 = vpack.c.b16 %v1152, %v1146
        %v1327 = vpack.c.b16 %v1153, %v1147
        %v1328 = vpack.c.b16 %v1154, %v1148
        %v1329 = vpack.c.b16 %v1161, %v1155
        %v1330 = vpack.c.b16 %v1162, %v1156
        %v1331 = vpack.c.b16 %v1163, %v1157
        %v1332 = vpack.c.b16 %v1164, %v1158
        %v1333 = vpack.c.b16 %v1165, %v1159
        %v1334 = vpack.c.b16 %v1166, %v1160
        %v1335 = vpack.c.b16 %v1173, %v1167
        %v1336 = vpack.c.b16 %v1174, %v1168
        %v1337 = vpack.c.b16 %v1175, %v1169
        %v1338 = vpack.c.b16 %v1176, %v1170
        %v1339 = vpack.c.b16 %v1177, %v1171
        %v1340 = vpack.c.b16 %v1178, %v1172
        %v1341 = vpack.c.b16 %v1185, %v1179
        %v1342 = vpack.c.b16 %v1186, %v1180
        %v1343 = vpack.c.b16 %v1187, %v1181
        %v1344 = vpack.c.b16 %v1188, %v1182
        %v1345 = vpack.c.b16 %v1189, %v1183
        %v1346 = vpack.c.b16 %v1190, %v1184
        %v1347 = vpack.c.b16 %v1197, %v1191
        %v1348 = vpack.c.b16 %v1198, %v1192
        %v1349 = vpack.c.b16 %v1199, %v1193
        %v1350 = vpack.c.b16 %v1200, %v1194
        %v1351 = vpack.c.b16 %v1201, %v1195
        %v1352 = vpack.c.b16 %v1202, %v1196
        %v1353 = vpack.c.b16 %v1209, %v1203
        %v1354 = vpack.c.b16 %v1210, %v1204
        %v1355 = vpack.c.b16 %v1211, %v1205
        %v1356 = vpack.c.b16 %v1212, %v1206
        %v1357 = vpack.c.b16 %v1213, %v1207
        %v1358 = vpack.c.b16 %v1214, %v1208
        %v1359 = vpack.c.b16 %v1221, %v1215
        %v1360 = vpack.c.b16 %v1222, %v1216
        %v1361 = vpack.c.b16 %v1223, %v1217
        %v1362 = vpack.c.b16 %v1224, %v1218
        %v1363 = vpack.c.b16 %v1225, %v1219
        %v1364 = vpack.c.b16 %v1226, %v1220
        %v1365 = vpack.c.b16 %v1233, %v1227
        %v1366 = vpack.c.b16 %v1234, %v1228
        %v1367 = vpack.c.b16 %v1235, %v1229
        %v1368 = vpack.c.b16 %v1236, %v1230
        %v1369 = vpack.c.b16 %v1237, %v1231
        %v1370 = vpack.c.b16 %v1238, %v1232
        %v1371 = vpack.c.b16 %v1245, %v1239
        %v1372 = vpack.c.b16 %v1246, %v1240
        %v1373 = vpack.c.b16 %v1247, %v1241
        %v1374 = vpack.c.b16 %v1248, %v1242
        %v1375 = vpack.c.b16 %v1249, %v1243
        %v1376 = vpack.c.b16 %v1250, %v1244
        %v1377 = vpack.c.b16 %v1257, %v1251
        %v1378 = vpack.c.b16 %v1258, %v1252
        %v1379 = vpack.c.b16 %v1259, %v1253
        %v1380 = vpack.c.b16 %v1260, %v1254
        %v1381 = vpack.c.b16 %v1261, %v1255
        %v1382 = vpack.c.b16 %v1262, %v1256
        %v1383 = vpack.c.b16 %v1269, %v1263
        %v1384 = vpack.c.b16 %v1270, %v1264
        %v1385 = vpack.c.b16 %v1271, %v1265
        %v1386 = vpack.c.b16 %v1272, %v1266
        %v1387 = vpack.c.b16 %v1273, %v1267
        %v1388 = vpack.c.b16 %v1274, %v1268
        %v1389 = vpack.c.b16 %v1281, %v1275
        %v1390 = vpack.c.b16 %v1282, %v1276
        %v1391 = vpack.c.b16 %v1283, %v1277
        %v1392 = vpack.c.b16 %v1284, %v1278
        %v1393 = vpack.c.b16 %v1285, %v1279
        %v1394 = vpack.c.b16 %v1286, %v1280
        %v1395 = vpack.c.b16 %v1293, %v1287
        %v1396 = vpack.c.b16 %v1294, %v1288
        %v1397 = vpack.c.b16 %v1295, %v1289
        %v1398 = vpack.c.b16 %v1296, %v1290
        %v1399 = vpack.c.b16 %v1297, %v1291
        %v1400 = vpack.c.b16 %v1298, %v1292
        %v1401 = vpack.c.b16 %v1305, %v1299
        %v1402 = vpack.c.b16 %v1306, %v1300
        %v1403 = vpack.c.b16 %v1307, %v1301
        %v1404 = vpack.c.b16 %v1308, %v1302
        %v1405 = vpack.c.b16 %v1309, %v1303
        %v1406 = vpack.c.b16 %v1310, %v1304
        %1503 = vmatpush.bf16.msra.mxu0 %v1353
        %1504 = vmatpush.bf16.msra.mxu0 %v1347
        %1505 = vmatpush.bf16.msra.mxu0 %v1341
        %1506 = vmatpush.bf16.msra.mxu0 %v1335
        %1507 = vmatpush.bf16.msra.mxu0 %v1329
        %1508 = vmatpush.bf16.msra.mxu0 %v1323
        %1509 = vmatpush.bf16.msra.mxu0 %v1317
        %1510 = vmatpush.bf16.msra.mxu0 %v1311
        %1511 = vmatmul.bf16.gmra.mxu0 %v897
        %v1512 = vpop.f32.mrf.mxu0
        %v1513 = vadd.f32 %v1011, %v1512
        %v1514 = vpop.f32.mrf.mxu0
        %v1515 = vadd.f32 %v1011, %v1514
        %1516 = vmatmul.bf16.gmra.mxu0 %v899
        %v1517 = vpop.f32.mrf.mxu0
        %v1518 = vadd.f32 %v1011, %v1517
        %v1519 = vpop.f32.mrf.mxu0
        %v1520 = vadd.f32 %v1011, %v1519
        %1521 = vmatmul.bf16.gmra.mxu0 %v901
        %v1522 = vpop.f32.mrf.mxu0
        %v1523 = vadd.f32 %v1011, %v1522
        %v1524 = vpop.f32.mrf.mxu0
        %v1525 = vadd.f32 %v1011, %v1524
        %1526 = vmatmul.bf16.gmra.mxu0 %v903
        %v1527 = vpop.f32.mrf.mxu0
        %v1528 = vadd.f32 %v1011, %v1527
        %v1529 = vpop.f32.mrf.mxu0
        %v1530 = vadd.f32 %v1011, %v1529
        %1531 = vmatmul.bf16.gmra.mxu0 %v905
        %v1532 = vpop.f32.mrf.mxu0
        %v1533 = vadd.f32 %v1011, %v1532
        %v1534 = vpop.f32.mrf.mxu0
        %v1535 = vadd.f32 %v1011, %v1534
        %1536 = vmatmul.bf16.gmra.mxu0 %v907
        %v1537 = vpop.f32.mrf.mxu0
        %v1538 = vadd.f32 %v1011, %v1537
        %v1539 = vpop.f32.mrf.mxu0
        %v1540 = vadd.f32 %v1011, %v1539
        %1541 = vmatmul.bf16.gmra.mxu0 %v909
        %v1542 = vpop.f32.mrf.mxu0
        %v1543 = vadd.f32 %v1011, %v1542
        %v1544 = vpop.f32.mrf.mxu0
        %v1545 = vadd.f32 %v1011, %v1544
        %1546 = vmatmul.bf16.gmra.mxu0 %v911
        %v1547 = vpop.f32.mrf.mxu0
        %v1548 = vadd.f32 %v1011, %v1547
        %v1549 = vpop.f32.mrf.mxu0
        %v1550 = vadd.f32 %v1011, %v1549
        %1551 = vdwg.mxu0
        %1552 = vmatpush.bf16.msra.mxu0 %v1401
        %1553 = vmatpush.bf16.msra.mxu0 %v1395
        %1554 = vmatpush.bf16.msra.mxu0 %v1389
        %1555 = vmatpush.bf16.msra.mxu0 %v1383
        %1556 = vmatpush.bf16.msra.mxu0 %v1377
        %1557 = vmatpush.bf16.msra.mxu0 %v1371
        %1558 = vmatpush.bf16.msra.mxu0 %v1365
        %1559 = vmatpush.bf16.msra.mxu0 %v1359
        %1560 = vmatmul.bf16.gmra.mxu0 %v898
        %v1561 = vpop.f32.mrf.mxu0
        %v1562 = vadd.f32 %v1513, %v1561
        %v1563 = vpop.f32.mrf.mxu0
        %v1564 = vadd.f32 %v1515, %v1563
        %1565 = vmatmul.bf16.gmra.mxu0 %v900
        %v1566 = vpop.f32.mrf.mxu0
        %v1567 = vadd.f32 %v1518, %v1566
        %v1568 = vpop.f32.mrf.mxu0
        %v1569 = vadd.f32 %v1520, %v1568
        %1570 = vmatmul.bf16.gmra.mxu0 %v902
        %v1571 = vpop.f32.mrf.mxu0
        %v1572 = vadd.f32 %v1523, %v1571
        %v1573 = vpop.f32.mrf.mxu0
        %v1574 = vadd.f32 %v1525, %v1573
        %1575 = vmatmul.bf16.gmra.mxu0 %v904
        %v1576 = vpop.f32.mrf.mxu0
        %v1577 = vadd.f32 %v1528, %v1576
        %v1578 = vpop.f32.mrf.mxu0
        %v1579 = vadd.f32 %v1530, %v1578
        %1580 = vmatmul.bf16.gmra.mxu0 %v906
        %v1581 = vpop.f32.mrf.mxu0
        %v1582 = vadd.f32 %v1533, %v1581
        %v1583 = vpop.f32.mrf.mxu0
        %v1584 = vadd.f32 %v1535, %v1583
        %1585 = vmatmul.bf16.gmra.mxu0 %v908
        %v1586 = vpop.f32.mrf.mxu0
        %v1587 = vadd.f32 %v1538, %v1586
        %v1588 = vpop.f32.mrf.mxu0
        %v1589 = vadd.f32 %v1540, %v1588
        %1590 = vmatmul.bf16.gmra.mxu0 %v910
        %v1591 = vpop.f32.mrf.mxu0
        %v1592 = vadd.f32 %v1543, %v1591
        %v1593 = vpop.f32.mrf.mxu0
        %v1594 = vadd.f32 %v1545, %v1593
        %1595 = vmatmul.bf16.gmra.mxu0 %v912
        %v1596 = vpop.f32.mrf.mxu0
        %v1597 = vadd.f32 %v1548, %v1596
        %v1598 = vpop.f32.mrf.mxu0
        %v1599 = vadd.f32 %v1550, %v1598
        %1600 = vdwg.mxu0
        %1601 = vmatpush.bf16.msra.mxu0 %v1354
        %1602 = vmatpush.bf16.msra.mxu0 %v1348
        %1603 = vmatpush.bf16.msra.mxu0 %v1342
        %1604 = vmatpush.bf16.msra.mxu0 %v1336
        %1605 = vmatpush.bf16.msra.mxu0 %v1330
        %1606 = vmatpush.bf16.msra.mxu0 %v1324
        %1607 = vmatpush.bf16.msra.mxu0 %v1318
        %1608 = vmatpush.bf16.msra.mxu0 %v1312
        %1609 = vmatmul.bf16.gmra.mxu0 %v897
        %v1610 = vpop.f32.mrf.mxu0
        %v1611 = vadd.f32 %v1012, %v1610
        %v1612 = vpop.f32.mrf.mxu0
        %v1613 = vadd.f32 %v1012, %v1612
        %1614 = vmatmul.bf16.gmra.mxu0 %v899
        %v1615 = vpop.f32.mrf.mxu0
        %v1616 = vadd.f32 %v1012, %v1615
        %v1617 = vpop.f32.mrf.mxu0
        %v1618 = vadd.f32 %v1012, %v1617
        %1619 = vmatmul.bf16.gmra.mxu0 %v901
        %v1620 = vpop.f32.mrf.mxu0
        %v1621 = vadd.f32 %v1012, %v1620
        %v1622 = vpop.f32.mrf.mxu0
        %v1623 = vadd.f32 %v1012, %v1622
        %1624 = vmatmul.bf16.gmra.mxu0 %v903
        %v1625 = vpop.f32.mrf.mxu0
        %v1626 = vadd.f32 %v1012, %v1625
        %v1627 = vpop.f32.mrf.mxu0
        %v1628 = vadd.f32 %v1012, %v1627
        %1629 = vmatmul.bf16.gmra.mxu0 %v905
        %v1630 = vpop.f32.mrf.mxu0
        %v1631 = vadd.f32 %v1012, %v1630
        %v1632 = vpop.f32.mrf.mxu0
        %v1633 = vadd.f32 %v1012, %v1632
        %1634 = vmatmul.bf16.gmra.mxu0 %v907
        %v1635 = vpop.f32.mrf.mxu0
        %v1636 = vadd.f32 %v1012, %v1635
        %v1637 = vpop.f32.mrf.mxu0
        %v1638 = vadd.f32 %v1012, %v1637
        %1639 = vmatmul.bf16.gmra.mxu0 %v909
        %v1640 = vpop.f32.mrf.mxu0
        %v1641 = vadd.f32 %v1012, %v1640
        %v1642 = vpop.f32.mrf.mxu0
        %v1643 = vadd.f32 %v1012, %v1642
        %1644 = vmatmul.bf16.gmra.mxu0 %v911
        %v1645 = vpop.f32.mrf.mxu0
        %v1646 = vadd.f32 %v1012, %v1645
        %v1647 = vpop.f32.mrf.mxu0
        %v1648 = vadd.f32 %v1012, %v1647
        %1649 = vdwg.mxu0
        %1650 = vmatpush.bf16.msra.mxu0 %v1402
        %1651 = vmatpush.bf16.msra.mxu0 %v1396
        %1652 = vmatpush.bf16.msra.mxu0 %v1390
        %1653 = vmatpush.bf16.msra.mxu0 %v1384
        %1654 = vmatpush.bf16.msra.mxu0 %v1378
        %1655 = vmatpush.bf16.msra.mxu0 %v1372
        %1656 = vmatpush.bf16.msra.mxu0 %v1366
        %1657 = vmatpush.bf16.msra.mxu0 %v1360
        %1658 = vmatmul.bf16.gmra.mxu0 %v898
        %v1659 = vpop.f32.mrf.mxu0
        %v1660 = vadd.f32 %v1611, %v1659
        %v1661 = vpop.f32.mrf.mxu0
        %v1662 = vadd.f32 %v1613, %v1661
        %1663 = vmatmul.bf16.gmra.mxu0 %v900
        %v1664 = vpop.f32.mrf.mxu0
        %v1665 = vadd.f32 %v1616, %v1664
        %v1666 = vpop.f32.mrf.mxu0
        %v1667 = vadd.f32 %v1618, %v1666
        %1668 = vmatmul.bf16.gmra.mxu0 %v902
        %v1669 = vpop.f32.mrf.mxu0
        %v1670 = vadd.f32 %v1621, %v1669
        %v1671 = vpop.f32.mrf.mxu0
        %v1672 = vadd.f32 %v1623, %v1671
        %1673 = vmatmul.bf16.gmra.mxu0 %v904
        %v1674 = vpop.f32.mrf.mxu0
        %v1675 = vadd.f32 %v1626, %v1674
        %v1676 = vpop.f32.mrf.mxu0
        %v1677 = vadd.f32 %v1628, %v1676
        %1678 = vmatmul.bf16.gmra.mxu0 %v906
        %v1679 = vpop.f32.mrf.mxu0
        %v1680 = vadd.f32 %v1631, %v1679
        %v1681 = vpop.f32.mrf.mxu0
        %v1682 = vadd.f32 %v1633, %v1681
        %1683 = vmatmul.bf16.gmra.mxu0 %v908
        %v1684 = vpop.f32.mrf.mxu0
        %v1685 = vadd.f32 %v1636, %v1684
        %v1686 = vpop.f32.mrf.mxu0
        %v1687 = vadd.f32 %v1638, %v1686
        %1688 = vmatmul.bf16.gmra.mxu0 %v910
        %v1689 = vpop.f32.mrf.mxu0
        %v1690 = vadd.f32 %v1641, %v1689
        %v1691 = vpop.f32.mrf.mxu0
        %v1692 = vadd.f32 %v1643, %v1691
        %1693 = vmatmul.bf16.gmra.mxu0 %v912
        %v1694 = vpop.f32.mrf.mxu0
        %v1695 = vadd.f32 %v1646, %v1694
        %v1696 = vpop.f32.mrf.mxu0
        %v1697 = vadd.f32 %v1648, %v1696
        %1698 = vdwg.mxu0
        %1699 = vmatpush.bf16.msra.mxu0 %v1355
        %1700 = vmatpush.bf16.msra.mxu0 %v1349
        %1701 = vmatpush.bf16.msra.mxu0 %v1343
        %1702 = vmatpush.bf16.msra.mxu0 %v1337
        %1703 = vmatpush.bf16.msra.mxu0 %v1331
        %1704 = vmatpush.bf16.msra.mxu0 %v1325
        %1705 = vmatpush.bf16.msra.mxu0 %v1319
        %1706 = vmatpush.bf16.msra.mxu0 %v1313
        %1707 = vmatmul.bf16.gmra.mxu0 %v897
        %v1708 = vpop.f32.mrf.mxu0
        %v1709 = vadd.f32 %v1013, %v1708
        %v1710 = vpop.f32.mrf.mxu0
        %v1711 = vadd.f32 %v1013, %v1710
        %1712 = vmatmul.bf16.gmra.mxu0 %v899
        %v1713 = vpop.f32.mrf.mxu0
        %v1714 = vadd.f32 %v1013, %v1713
        %v1715 = vpop.f32.mrf.mxu0
        %v1716 = vadd.f32 %v1013, %v1715
        %1717 = vmatmul.bf16.gmra.mxu0 %v901
        %v1718 = vpop.f32.mrf.mxu0
        %v1719 = vadd.f32 %v1013, %v1718
        %v1720 = vpop.f32.mrf.mxu0
        %v1721 = vadd.f32 %v1013, %v1720
        %1722 = vmatmul.bf16.gmra.mxu0 %v903
        %v1723 = vpop.f32.mrf.mxu0
        %v1724 = vadd.f32 %v1013, %v1723
        %v1725 = vpop.f32.mrf.mxu0
        %v1726 = vadd.f32 %v1013, %v1725
        %1727 = vmatmul.bf16.gmra.mxu0 %v905
        %v1728 = vpop.f32.mrf.mxu0
        %v1729 = vadd.f32 %v1013, %v1728
        %v1730 = vpop.f32.mrf.mxu0
        %v1731 = vadd.f32 %v1013, %v1730
        %1732 = vmatmul.bf16.gmra.mxu0 %v907
        %v1733 = vpop.f32.mrf.mxu0
        %v1734 = vadd.f32 %v1013, %v1733
        %v1735 = vpop.f32.mrf.mxu0
        %v1736 = vadd.f32 %v1013, %v1735
        %1737 = vmatmul.bf16.gmra.mxu0 %v909
        %v1738 = vpop.f32.mrf.mxu0
        %v1739 = vadd.f32 %v1013, %v1738
        %v1740 = vpop.f32.mrf.mxu0
        %v1741 = vadd.f32 %v1013, %v1740
        %1742 = vmatmul.bf16.gmra.mxu0 %v911
        %v1743 = vpop.f32.mrf.mxu0
        %v1744 = vadd.f32 %v1013, %v1743
        %v1745 = vpop.f32.mrf.mxu0
        %v1746 = vadd.f32 %v1013, %v1745
        %1747 = vdwg.mxu0
        %1748 = vmatpush.bf16.msra.mxu0 %v1403
        %1749 = vmatpush.bf16.msra.mxu0 %v1397
        %1750 = vmatpush.bf16.msra.mxu0 %v1391
        %1751 = vmatpush.bf16.msra.mxu0 %v1385
        %1752 = vmatpush.bf16.msra.mxu0 %v1379
        %1753 = vmatpush.bf16.msra.mxu0 %v1373
        %1754 = vmatpush.bf16.msra.mxu0 %v1367
        %1755 = vmatpush.bf16.msra.mxu0 %v1361
        %1756 = vmatmul.bf16.gmra.mxu0 %v898
        %v1757 = vpop.f32.mrf.mxu0
        %v1758 = vadd.f32 %v1709, %v1757
        %v1759 = vpop.f32.mrf.mxu0
        %v1760 = vadd.f32 %v1711, %v1759
        %1761 = vmatmul.bf16.gmra.mxu0 %v900
        %v1762 = vpop.f32.mrf.mxu0
        %v1763 = vadd.f32 %v1714, %v1762
        %v1764 = vpop.f32.mrf.mxu0
        %v1765 = vadd.f32 %v1716, %v1764
        %1766 = vmatmul.bf16.gmra.mxu0 %v902
        %v1767 = vpop.f32.mrf.mxu0
        %v1768 = vadd.f32 %v1719, %v1767
        %v1769 = vpop.f32.mrf.mxu0
        %v1770 = vadd.f32 %v1721, %v1769
        %1771 = vmatmul.bf16.gmra.mxu0 %v904
        %v1772 = vpop.f32.mrf.mxu0
        %v1773 = vadd.f32 %v1724, %v1772
        %v1774 = vpop.f32.mrf.mxu0
        %v1775 = vadd.f32 %v1726, %v1774
        %1776 = vmatmul.bf16.gmra.mxu0 %v906
        %v1777 = vpop.f32.mrf.mxu0
        %v1778 = vadd.f32 %v1729, %v1777
        %v1779 = vpop.f32.mrf.mxu0
        %v1780 = vadd.f32 %v1731, %v1779
        %1781 = vmatmul.bf16.gmra.mxu0 %v908
        %v1782 = vpop.f32.mrf.mxu0
        %v1783 = vadd.f32 %v1734, %v1782
        %v1784 = vpop.f32.mrf.mxu0
        %v1785 = vadd.f32 %v1736, %v1784
        %1786 = vmatmul.bf16.gmra.mxu0 %v910
        %v1787 = vpop.f32.mrf.mxu0
        %v1788 = vadd.f32 %v1739, %v1787
        %v1789 = vpop.f32.mrf.mxu0
        %v1790 = vadd.f32 %v1741, %v1789
        %1791 = vmatmul.bf16.gmra.mxu0 %v912
        %v1792 = vpop.f32.mrf.mxu0
        %v1793 = vadd.f32 %v1744, %v1792
        %v1794 = vpop.f32.mrf.mxu0
        %v1795 = vadd.f32 %v1746, %v1794
        %1796 = vdwg.mxu0
        %1797 = vmatpush.bf16.msra.mxu0 %v1356
        %1798 = vmatpush.bf16.msra.mxu0 %v1350
        %1799 = vmatpush.bf16.msra.mxu0 %v1344
        %1800 = vmatpush.bf16.msra.mxu0 %v1338
        %1801 = vmatpush.bf16.msra.mxu0 %v1332
        %1802 = vmatpush.bf16.msra.mxu0 %v1326
        %1803 = vmatpush.bf16.msra.mxu0 %v1320
        %1804 = vmatpush.bf16.msra.mxu0 %v1314
        %1805 = vmatmul.bf16.gmra.mxu0 %v897
        %v1806 = vpop.f32.mrf.mxu0
        %v1807 = vadd.f32 %v1014, %v1806
        %v1808 = vpop.f32.mrf.mxu0
        %v1809 = vadd.f32 %v1014, %v1808
        %1810 = vmatmul.bf16.gmra.mxu0 %v899
        %v1811 = vpop.f32.mrf.mxu0
        %v1812 = vadd.f32 %v1014, %v1811
        %v1813 = vpop.f32.mrf.mxu0
        %v1814 = vadd.f32 %v1014, %v1813
        %1815 = vmatmul.bf16.gmra.mxu0 %v901
        %v1816 = vpop.f32.mrf.mxu0
        %v1817 = vadd.f32 %v1014, %v1816
        %v1818 = vpop.f32.mrf.mxu0
        %v1819 = vadd.f32 %v1014, %v1818
        %1820 = vmatmul.bf16.gmra.mxu0 %v903
        %v1821 = vpop.f32.mrf.mxu0
        %v1822 = vadd.f32 %v1014, %v1821
        %v1823 = vpop.f32.mrf.mxu0
        %v1824 = vadd.f32 %v1014, %v1823
        %1825 = vmatmul.bf16.gmra.mxu0 %v905
        %v1826 = vpop.f32.mrf.mxu0
        %v1827 = vadd.f32 %v1014, %v1826
        %v1828 = vpop.f32.mrf.mxu0
        %v1829 = vadd.f32 %v1014, %v1828
        %1830 = vmatmul.bf16.gmra.mxu0 %v907
        %v1831 = vpop.f32.mrf.mxu0
        %v1832 = vadd.f32 %v1014, %v1831
        %v1833 = vpop.f32.mrf.mxu0
        %v1834 = vadd.f32 %v1014, %v1833
        %1835 = vmatmul.bf16.gmra.mxu0 %v909
        %v1836 = vpop.f32.mrf.mxu0
        %v1837 = vadd.f32 %v1014, %v1836
        %v1838 = vpop.f32.mrf.mxu0
        %v1839 = vadd.f32 %v1014, %v1838
        %1840 = vmatmul.bf16.gmra.mxu0 %v911
        %v1841 = vpop.f32.mrf.mxu0
        %v1842 = vadd.f32 %v1014, %v1841
        %v1843 = vpop.f32.mrf.mxu0
        %v1844 = vadd.f32 %v1014, %v1843
        %1845 = vdwg.mxu0
        %1846 = vmatpush.bf16.msra.mxu0 %v1404
        %1847 = vmatpush.bf16.msra.mxu0 %v1398
        %1848 = vmatpush.bf16.msra.mxu0 %v1392
        %1849 = vmatpush.bf16.msra.mxu0 %v1386
        %1850 = vmatpush.bf16.msra.mxu0 %v1380
        %1851 = vmatpush.bf16.msra.mxu0 %v1374
        %1852 = vmatpush.bf16.msra.mxu0 %v1368
        %1853 = vmatpush.bf16.msra.mxu0 %v1362
        %1854 = vmatmul.bf16.gmra.mxu0 %v898
        %v1855 = vpop.f32.mrf.mxu0
        %v1856 = vadd.f32 %v1807, %v1855
        %v1857 = vpop.f32.mrf.mxu0
        %v1858 = vadd.f32 %v1809, %v1857
        %1859 = vmatmul.bf16.gmra.mxu0 %v900
        %v1860 = vpop.f32.mrf.mxu0
        %v1861 = vadd.f32 %v1812, %v1860
        %v1862 = vpop.f32.mrf.mxu0
        %v1863 = vadd.f32 %v1814, %v1862
        %1864 = vmatmul.bf16.gmra.mxu0 %v902
        %v1865 = vpop.f32.mrf.mxu0
        %v1866 = vadd.f32 %v1817, %v1865
        %v1867 = vpop.f32.mrf.mxu0
        %v1868 = vadd.f32 %v1819, %v1867
        %1869 = vmatmul.bf16.gmra.mxu0 %v904
        %v1870 = vpop.f32.mrf.mxu0
        %v1871 = vadd.f32 %v1822, %v1870
        %v1872 = vpop.f32.mrf.mxu0
        %v1873 = vadd.f32 %v1824, %v1872
        %1874 = vmatmul.bf16.gmra.mxu0 %v906
        %v1875 = vpop.f32.mrf.mxu0
        %v1876 = vadd.f32 %v1827, %v1875
        %v1877 = vpop.f32.mrf.mxu0
        %v1878 = vadd.f32 %v1829, %v1877
        %1879 = vmatmul.bf16.gmra.mxu0 %v908
        %v1880 = vpop.f32.mrf.mxu0
        %v1881 = vadd.f32 %v1832, %v1880
        %v1882 = vpop.f32.mrf.mxu0
        %v1883 = vadd.f32 %v1834, %v1882
        %1884 = vmatmul.bf16.gmra.mxu0 %v910
        %v1885 = vpop.f32.mrf.mxu0
        %v1886 = vadd.f32 %v1837, %v1885
        %v1887 = vpop.f32.mrf.mxu0
        %v1888 = vadd.f32 %v1839, %v1887
        %1889 = vmatmul.bf16.gmra.mxu0 %v912
        %v1890 = vpop.f32.mrf.mxu0
        %v1891 = vadd.f32 %v1842, %v1890
        %v1892 = vpop.f32.mrf.mxu0
        %v1893 = vadd.f32 %v1844, %v1892
        %1894 = vdwg.mxu0
        %1895 = vmatpush.bf16.msra.mxu0 %v1357
        %1896 = vmatpush.bf16.msra.mxu0 %v1351
        %1897 = vmatpush.bf16.msra.mxu0 %v1345
        %1898 = vmatpush.bf16.msra.mxu0 %v1339
        %1899 = vmatpush.bf16.msra.mxu0 %v1333
        %1900 = vmatpush.bf16.msra.mxu0 %v1327
        %1901 = vmatpush.bf16.msra.mxu0 %v1321
        %1902 = vmatpush.bf16.msra.mxu0 %v1315
        %1903 = vmatmul.bf16.gmra.mxu0 %v897
        %v1904 = vpop.f32.mrf.mxu0
        %v1905 = vadd.f32 %v1015, %v1904
        %v1906 = vpop.f32.mrf.mxu0
        %v1907 = vadd.f32 %v1015, %v1906
        %1908 = vmatmul.bf16.gmra.mxu0 %v899
        %v1909 = vpop.f32.mrf.mxu0
        %v1910 = vadd.f32 %v1015, %v1909
        %v1911 = vpop.f32.mrf.mxu0
        %v1912 = vadd.f32 %v1015, %v1911
        %1913 = vmatmul.bf16.gmra.mxu0 %v901
        %v1914 = vpop.f32.mrf.mxu0
        %v1915 = vadd.f32 %v1015, %v1914
        %v1916 = vpop.f32.mrf.mxu0
        %v1917 = vadd.f32 %v1015, %v1916
        %1918 = vmatmul.bf16.gmra.mxu0 %v903
        %v1919 = vpop.f32.mrf.mxu0
        %v1920 = vadd.f32 %v1015, %v1919
        %v1921 = vpop.f32.mrf.mxu0
        %v1922 = vadd.f32 %v1015, %v1921
        %1923 = vmatmul.bf16.gmra.mxu0 %v905
        %v1924 = vpop.f32.mrf.mxu0
        %v1925 = vadd.f32 %v1015, %v1924
        %v1926 = vpop.f32.mrf.mxu0
        %v1927 = vadd.f32 %v1015, %v1926
        %1928 = vmatmul.bf16.gmra.mxu0 %v907
        %v1929 = vpop.f32.mrf.mxu0
        %v1930 = vadd.f32 %v1015, %v1929
        %v1931 = vpop.f32.mrf.mxu0
        %v1932 = vadd.f32 %v1015, %v1931
        %1933 = vmatmul.bf16.gmra.mxu0 %v909
        %v1934 = vpop.f32.mrf.mxu0
        %v1935 = vadd.f32 %v1015, %v1934
        %v1936 = vpop.f32.mrf.mxu0
        %v1937 = vadd.f32 %v1015, %v1936
        %1938 = vmatmul.bf16.gmra.mxu0 %v911
        %v1939 = vpop.f32.mrf.mxu0
        %v1940 = vadd.f32 %v1015, %v1939
        %v1941 = vpop.f32.mrf.mxu0
        %v1942 = vadd.f32 %v1015, %v1941
        %1943 = vdwg.mxu0
        %1944 = vmatpush.bf16.msra.mxu0 %v1405
        %1945 = vmatpush.bf16.msra.mxu0 %v1399
        %1946 = vmatpush.bf16.msra.mxu0 %v1393
        %1947 = vmatpush.bf16.msra.mxu0 %v1387
        %1948 = vmatpush.bf16.msra.mxu0 %v1381
        %1949 = vmatpush.bf16.msra.mxu0 %v1375
        %1950 = vmatpush.bf16.msra.mxu0 %v1369
        %1951 = vmatpush.bf16.msra.mxu0 %v1363
        %1952 = vmatmul.bf16.gmra.mxu0 %v898
        %v1953 = vpop.f32.mrf.mxu0
        %v1954 = vadd.f32 %v1905, %v1953
        %v1955 = vpop.f32.mrf.mxu0
        %v1956 = vadd.f32 %v1907, %v1955
        %1957 = vmatmul.bf16.gmra.mxu0 %v900
        %v1958 = vpop.f32.mrf.mxu0
        %v1959 = vadd.f32 %v1910, %v1958
        %v1960 = vpop.f32.mrf.mxu0
        %v1961 = vadd.f32 %v1912, %v1960
        %1962 = vmatmul.bf16.gmra.mxu0 %v902
        %v1963 = vpop.f32.mrf.mxu0
        %v1964 = vadd.f32 %v1915, %v1963
        %v1965 = vpop.f32.mrf.mxu0
        %v1966 = vadd.f32 %v1917, %v1965
        %1967 = vmatmul.bf16.gmra.mxu0 %v904
        %v1968 = vpop.f32.mrf.mxu0
        %v1969 = vadd.f32 %v1920, %v1968
        %v1970 = vpop.f32.mrf.mxu0
        %v1971 = vadd.f32 %v1922, %v1970
        %1972 = vmatmul.bf16.gmra.mxu0 %v906
        %v1973 = vpop.f32.mrf.mxu0
        %v1974 = vadd.f32 %v1925, %v1973
        %v1975 = vpop.f32.mrf.mxu0
        %v1976 = vadd.f32 %v1927, %v1975
        %1977 = vmatmul.bf16.gmra.mxu0 %v908
        %v1978 = vpop.f32.mrf.mxu0
        %v1979 = vadd.f32 %v1930, %v1978
        %v1980 = vpop.f32.mrf.mxu0
        %v1981 = vadd.f32 %v1932, %v1980
        %1982 = vmatmul.bf16.gmra.mxu0 %v910
        %v1983 = vpop.f32.mrf.mxu0
        %v1984 = vadd.f32 %v1935, %v1983
        %v1985 = vpop.f32.mrf.mxu0
        %v1986 = vadd.f32 %v1937, %v1985
        %1987 = vmatmul.bf16.gmra.mxu0 %v912
        %v1988 = vpop.f32.mrf.mxu0
        %v1989 = vadd.f32 %v1940, %v1988
        %v1990 = vpop.f32.mrf.mxu0
        %v1991 = vadd.f32 %v1942, %v1990
        %1992 = vdwg.mxu0
        %1993 = vmatpush.bf16.msra.mxu0 %v1358
        %1994 = vmatpush.bf16.msra.mxu0 %v1352
        %1995 = vmatpush.bf16.msra.mxu0 %v1346
        %1996 = vmatpush.bf16.msra.mxu0 %v1340
        %1997 = vmatpush.bf16.msra.mxu0 %v1334
        %1998 = vmatpush.bf16.msra.mxu0 %v1328
        %1999 = vmatpush.bf16.msra.mxu0 %v1322
        %2000 = vmatpush.bf16.msra.mxu0 %v1316
        %2001 = vmatmul.bf16.gmra.mxu0 %v897
        %v2002 = vpop.f32.mrf.mxu0
        %v2003 = vadd.f32 %v1016, %v2002
        %v2004 = vpop.f32.mrf.mxu0
        %v2005 = vadd.f32 %v1016, %v2004
        %2006 = vmatmul.bf16.gmra.mxu0 %v899
        %v2007 = vpop.f32.mrf.mxu0
        %v2008 = vadd.f32 %v1016, %v2007
        %v2009 = vpop.f32.mrf.mxu0
        %v2010 = vadd.f32 %v1016, %v2009
        %2011 = vmatmul.bf16.gmra.mxu0 %v901
        %v2012 = vpop.f32.mrf.mxu0
        %v2013 = vadd.f32 %v1016, %v2012
        %v2014 = vpop.f32.mrf.mxu0
        %v2015 = vadd.f32 %v1016, %v2014
        %2016 = vmatmul.bf16.gmra.mxu0 %v903
        %v2017 = vpop.f32.mrf.mxu0
        %v2018 = vadd.f32 %v1016, %v2017
        %v2019 = vpop.f32.mrf.mxu0
        %v2020 = vadd.f32 %v1016, %v2019
        %2021 = vmatmul.bf16.gmra.mxu0 %v905
        %v2022 = vpop.f32.mrf.mxu0
        %v2023 = vadd.f32 %v1016, %v2022
        %v2024 = vpop.f32.mrf.mxu0
        %v2025 = vadd.f32 %v1016, %v2024
        %2026 = vmatmul.bf16.gmra.mxu0 %v907
        %v2027 = vpop.f32.mrf.mxu0
        %v2028 = vadd.f32 %v1016, %v2027
        %v2029 = vpop.f32.mrf.mxu0
        %v2030 = vadd.f32 %v1016, %v2029
        %2031 = vmatmul.bf16.gmra.mxu0 %v909
        %v2032 = vpop.f32.mrf.mxu0
        %v2033 = vadd.f32 %v1016, %v2032
        %v2034 = vpop.f32.mrf.mxu0
        %v2035 = vadd.f32 %v1016, %v2034
        %2036 = vmatmul.bf16.gmra.mxu0 %v911
        %v2037 = vpop.f32.mrf.mxu0
        %v2038 = vadd.f32 %v1016, %v2037
        %v2039 = vpop.f32.mrf.mxu0
        %v2040 = vadd.f32 %v1016, %v2039
        %2041 = vdwg.mxu0
        %2042 = vmatpush.bf16.msra.mxu0 %v1406
        %2043 = vmatpush.bf16.msra.mxu0 %v1400
        %2044 = vmatpush.bf16.msra.mxu0 %v1394
        %2045 = vmatpush.bf16.msra.mxu0 %v1388
        %2046 = vmatpush.bf16.msra.mxu0 %v1382
        %2047 = vmatpush.bf16.msra.mxu0 %v1376
        %2048 = vmatpush.bf16.msra.mxu0 %v1370
        %2049 = vmatpush.bf16.msra.mxu0 %v1364
        %2050 = vmatmul.bf16.gmra.mxu0 %v898
        %v2051 = vpop.f32.mrf.mxu0
        %v2052 = vadd.f32 %v2003, %v2051
        %v2053 = vpop.f32.mrf.mxu0
        %v2054 = vadd.f32 %v2005, %v2053
        %2055 = vmatmul.bf16.gmra.mxu0 %v900
        %v2056 = vpop.f32.mrf.mxu0
        %v2057 = vadd.f32 %v2008, %v2056
        %v2058 = vpop.f32.mrf.mxu0
        %v2059 = vadd.f32 %v2010, %v2058
        %2060 = vmatmul.bf16.gmra.mxu0 %v902
        %v2061 = vpop.f32.mrf.mxu0
        %v2062 = vadd.f32 %v2013, %v2061
        %v2063 = vpop.f32.mrf.mxu0
        %v2064 = vadd.f32 %v2015, %v2063
        %2065 = vmatmul.bf16.gmra.mxu0 %v904
        %v2066 = vpop.f32.mrf.mxu0
        %v2067 = vadd.f32 %v2018, %v2066
        %v2068 = vpop.f32.mrf.mxu0
        %v2069 = vadd.f32 %v2020, %v2068
        %2070 = vmatmul.bf16.gmra.mxu0 %v906
        %v2071 = vpop.f32.mrf.mxu0
        %v2072 = vadd.f32 %v2023, %v2071
        %v2073 = vpop.f32.mrf.mxu0
        %v2074 = vadd.f32 %v2025, %v2073
        %2075 = vmatmul.bf16.gmra.mxu0 %v908
        %v2076 = vpop.f32.mrf.mxu0
        %v2077 = vadd.f32 %v2028, %v2076
        %v2078 = vpop.f32.mrf.mxu0
        %v2079 = vadd.f32 %v2030, %v2078
        %2080 = vmatmul.bf16.gmra.mxu0 %v910
        %v2081 = vpop.f32.mrf.mxu0
        %v2082 = vadd.f32 %v2033, %v2081
        %v2083 = vpop.f32.mrf.mxu0
        %v2084 = vadd.f32 %v2035, %v2083
        %2085 = vmatmul.bf16.gmra.mxu0 %v912
        %v2086 = vpop.f32.mrf.mxu0
        %v2087 = vadd.f32 %v2038, %v2086
        %v2088 = vpop.f32.mrf.mxu0
        %v2089 = vadd.f32 %v2040, %v2088
        %2090 = vdwg.mxu0
        %v2091 = vmul.f32 %v1562, 0.088388346
        %v2092 = vmul.f32 %v1564, 0.088388346
        %v2093 = vmul.f32 %v1567, 0.088388346
        %v2094 = vmul.f32 %v1569, 0.088388346
        %v2095 = vmul.f32 %v1572, 0.088388346
        %v2096 = vmul.f32 %v1574, 0.088388346
        %v2097 = vmul.f32 %v1577, 0.088388346
        %v2098 = vmul.f32 %v1579, 0.088388346
        %v2099 = vmul.f32 %v1582, 0.088388346
        %v2100 = vmul.f32 %v1584, 0.088388346
        %v2101 = vmul.f32 %v1587, 0.088388346
        %v2102 = vmul.f32 %v1589, 0.088388346
        %v2103 = vmul.f32 %v1592, 0.088388346
        %v2104 = vmul.f32 %v1594, 0.088388346
        %v2105 = vmul.f32 %v1597, 0.088388346
        %v2106 = vmul.f32 %v1599, 0.088388346
        %v2107 = vpack.c.bf16 %v2091, %v2091
        %v2108 = vpack.c.bf16 %v2092, %v2092
        %v2109 = vpack.c.bf16 %v2093, %v2093
        %v2110 = vpack.c.bf16 %v2094, %v2094
        %v2111 = vpack.c.bf16 %v2095, %v2095
        %v2112 = vpack.c.bf16 %v2096, %v2096
        %v2113 = vpack.c.bf16 %v2097, %v2097
        %v2114 = vpack.c.bf16 %v2098, %v2098
        %v2115 = vpack.c.bf16 %v2099, %v2099
        %v2116 = vpack.c.bf16 %v2100, %v2100
        %v2117 = vpack.c.bf16 %v2101, %v2101
        %v2118 = vpack.c.bf16 %v2102, %v2102
        %v2119 = vpack.c.bf16 %v2103, %v2103
        %v2120 = vpack.c.bf16 %v2104, %v2104
        %v2121 = vpack.c.bf16 %v2105, %v2105
        %v2122 = vpack.c.bf16 %v2106, %v2106
        %2123 = vst [vmem:[%s363] sm:$0xf] %v2107
        %2124 = vst [vmem:[%s363 + $0x4] sm:$0xf] %v2108
        %2125 = vst [vmem:[%s363 + $0x8] sm:$0xf] %v2109
        %2126 = vst [vmem:[%s363 + $0xc] sm:$0xf] %v2110
        %2127 = vst [vmem:[%s363 + $0x10] sm:$0xf] %v2111
        %2128 = vst [vmem:[%s363 + $0x14] sm:$0xf] %v2112
        %2129 = vst [vmem:[%s363 + $0x18] sm:$0xf] %v2113
        %2130 = vst [vmem:[%s363 + $0x1c] sm:$0xf] %v2114
        %2131 = vst [vmem:[%s363 + $0x20] sm:$0xf] %v2115
        %2132 = vst [vmem:[%s363 + $0x24] sm:$0xf] %v2116
        %2133 = vst [vmem:[%s363 + $0x28] sm:$0xf] %v2117
        %2134 = vst [vmem:[%s363 + $0x2c] sm:$0xf] %v2118
        %2135 = vst [vmem:[%s363 + $0x30] sm:$0xf] %v2119
        %2136 = vst [vmem:[%s363 + $0x34] sm:$0xf] %v2120
        %2137 = vst [vmem:[%s363 + $0x38] sm:$0xf] %v2121
        %2138 = vst [vmem:[%s363 + $0x3c] sm:$0xf] %v2122
        %v2139 = vpack.c.bf16 %v1758, %v1758
        %v2140 = vpack.c.bf16 %v1760, %v1760
        %v2141 = vpack.c.bf16 %v1763, %v1763
        %v2142 = vpack.c.bf16 %v1765, %v1765
        %v2143 = vpack.c.bf16 %v1768, %v1768
        %v2144 = vpack.c.bf16 %v1770, %v1770
        %v2145 = vpack.c.bf16 %v1773, %v1773
        %v2146 = vpack.c.bf16 %v1775, %v1775
        %v2147 = vpack.c.bf16 %v1778, %v1778
        %v2148 = vpack.c.bf16 %v1780, %v1780
        %v2149 = vpack.c.bf16 %v1783, %v1783
        %v2150 = vpack.c.bf16 %v1785, %v1785
        %v2151 = vpack.c.bf16 %v1788, %v1788
        %v2152 = vpack.c.bf16 %v1790, %v1790
        %v2153 = vpack.c.bf16 %v1793, %v1793
        %v2154 = vpack.c.bf16 %v1795, %v1795
        %2155 = vst [vmem:[%s370] sm:$0xf] %v2139
        %2156 = vst [vmem:[%s370 + $0x4] sm:$0xf] %v2140
        %2157 = vst [vmem:[%s370 + $0x8] sm:$0xf] %v2141
        %2158 = vst [vmem:[%s370 + $0xc] sm:$0xf] %v2142
        %2159 = vst [vmem:[%s370 + $0x10] sm:$0xf] %v2143
        %2160 = vst [vmem:[%s370 + $0x14] sm:$0xf] %v2144
        %2161 = vst [vmem:[%s370 + $0x18] sm:$0xf] %v2145
        %2162 = vst [vmem:[%s370 + $0x1c] sm:$0xf] %v2146
        %2163 = vst [vmem:[%s370 + $0x20] sm:$0xf] %v2147
        %2164 = vst [vmem:[%s370 + $0x24] sm:$0xf] %v2148
        %2165 = vst [vmem:[%s370 + $0x28] sm:$0xf] %v2149
        %2166 = vst [vmem:[%s370 + $0x2c] sm:$0xf] %v2150
        %2167 = vst [vmem:[%s370 + $0x30] sm:$0xf] %v2151
        %2168 = vst [vmem:[%s370 + $0x34] sm:$0xf] %v2152
        %2169 = vst [vmem:[%s370 + $0x38] sm:$0xf] %v2153
        %2170 = vst [vmem:[%s370 + $0x3c] sm:$0xf] %v2154
        %v2171 = vpack.c.bf16 %v1954, %v1954
        %v2172 = vpack.c.bf16 %v1956, %v1956
        %v2173 = vpack.c.bf16 %v1959, %v1959
        %v2174 = vpack.c.bf16 %v1961, %v1961
        %v2175 = vpack.c.bf16 %v1964, %v1964
        %v2176 = vpack.c.bf16 %v1966, %v1966
        %v2177 = vpack.c.bf16 %v1969, %v1969
        %v2178 = vpack.c.bf16 %v1971, %v1971
        %v2179 = vpack.c.bf16 %v1974, %v1974
        %v2180 = vpack.c.bf16 %v1976, %v1976
        %v2181 = vpack.c.bf16 %v1979, %v1979
        %v2182 = vpack.c.bf16 %v1981, %v1981
        %v2183 = vpack.c.bf16 %v1984, %v1984
        %v2184 = vpack.c.bf16 %v1986, %v1986
        %v2185 = vpack.c.bf16 %v1989, %v1989
        %v2186 = vpack.c.bf16 %v1991, %v1991
        %2187 = vst [vmem:[%s377] sm:$0xf] %v2171
        %2188 = vst [vmem:[%s377 + $0x4] sm:$0xf] %v2172
        %2189 = vst [vmem:[%s377 + $0x8] sm:$0xf] %v2173
        %2190 = vst [vmem:[%s377 + $0xc] sm:$0xf] %v2174
        %2191 = vst [vmem:[%s377 + $0x10] sm:$0xf] %v2175
        %2192 = vst [vmem:[%s377 + $0x14] sm:$0xf] %v2176
        %2193 = vst [vmem:[%s377 + $0x18] sm:$0xf] %v2177
        %2194 = vst [vmem:[%s377 + $0x1c] sm:$0xf] %v2178
        %2195 = vst [vmem:[%s377 + $0x20] sm:$0xf] %v2179
        %2196 = vst [vmem:[%s377 + $0x24] sm:$0xf] %v2180
        %2197 = vst [vmem:[%s377 + $0x28] sm:$0xf] %v2181
        %2198 = vst [vmem:[%s377 + $0x2c] sm:$0xf] %v2182
        %2199 = vst [vmem:[%s377 + $0x30] sm:$0xf] %v2183
        %2200 = vst [vmem:[%s377 + $0x34] sm:$0xf] %v2184
        %2201 = vst [vmem:[%s377 + $0x38] sm:$0xf] %v2185
        %2202 = vst [vmem:[%s377 + $0x3c] sm:$0xf] %v2186
        %v2203 = vmul.f32 %v1660, 0.088388346
        %v2204 = vmul.f32 %v1662, 0.088388346
        %v2205 = vmul.f32 %v1665, 0.088388346
        %v2206 = vmul.f32 %v1667, 0.088388346
        %v2207 = vmul.f32 %v1670, 0.088388346
        %v2208 = vmul.f32 %v1672, 0.088388346
        %v2209 = vmul.f32 %v1675, 0.088388346
        %v2210 = vmul.f32 %v1677, 0.088388346
        %v2211 = vmul.f32 %v1680, 0.088388346
        %v2212 = vmul.f32 %v1682, 0.088388346
        %v2213 = vmul.f32 %v1685, 0.088388346
        %v2214 = vmul.f32 %v1687, 0.088388346
        %v2215 = vmul.f32 %v1690, 0.088388346
        %v2216 = vmul.f32 %v1692, 0.088388346
        %v2217 = vmul.f32 %v1695, 0.088388346
        %v2218 = vmul.f32 %v1697, 0.088388346
        %v2219 = vpack.c.bf16 %v2203, %v2203
        %v2220 = vpack.c.bf16 %v2204, %v2204
        %v2221 = vpack.c.bf16 %v2205, %v2205
        %v2222 = vpack.c.bf16 %v2206, %v2206
        %v2223 = vpack.c.bf16 %v2207, %v2207
        %v2224 = vpack.c.bf16 %v2208, %v2208
        %v2225 = vpack.c.bf16 %v2209, %v2209
        %v2226 = vpack.c.bf16 %v2210, %v2210
        %v2227 = vpack.c.bf16 %v2211, %v2211
        %v2228 = vpack.c.bf16 %v2212, %v2212
        %v2229 = vpack.c.bf16 %v2213, %v2213
        %v2230 = vpack.c.bf16 %v2214, %v2214
        %v2231 = vpack.c.bf16 %v2215, %v2215
        %v2232 = vpack.c.bf16 %v2216, %v2216
        %v2233 = vpack.c.bf16 %v2217, %v2217
        %v2234 = vpack.c.bf16 %v2218, %v2218
        %s2235 = scalar_lea.vmem %s363, 64 [#allocation11]
        %2236 = vst [vmem:[%s2235] sm:$0xf] %v2219
        %2237 = vst [vmem:[%s2235 + $0x4] sm:$0xf] %v2220
        %2238 = vst [vmem:[%s2235 + $0x8] sm:$0xf] %v2221
        %2239 = vst [vmem:[%s2235 + $0xc] sm:$0xf] %v2222
        %2240 = vst [vmem:[%s2235 + $0x10] sm:$0xf] %v2223
        %2241 = vst [vmem:[%s2235 + $0x14] sm:$0xf] %v2224
        %2242 = vst [vmem:[%s2235 + $0x18] sm:$0xf] %v2225
        %2243 = vst [vmem:[%s2235 + $0x1c] sm:$0xf] %v2226
        %2244 = vst [vmem:[%s2235 + $0x20] sm:$0xf] %v2227
        %2245 = vst [vmem:[%s2235 + $0x24] sm:$0xf] %v2228
        %2246 = vst [vmem:[%s2235 + $0x28] sm:$0xf] %v2229
        %2247 = vst [vmem:[%s2235 + $0x2c] sm:$0xf] %v2230
        %2248 = vst [vmem:[%s2235 + $0x30] sm:$0xf] %v2231
        %2249 = vst [vmem:[%s2235 + $0x34] sm:$0xf] %v2232
        %2250 = vst [vmem:[%s2235 + $0x38] sm:$0xf] %v2233
        %2251 = vst [vmem:[%s2235 + $0x3c] sm:$0xf] %v2234
        %v2252 = vpack.c.bf16 %v1856, %v1856
        %v2253 = vpack.c.bf16 %v1858, %v1858
        %v2254 = vpack.c.bf16 %v1861, %v1861
        %v2255 = vpack.c.bf16 %v1863, %v1863
        %v2256 = vpack.c.bf16 %v1866, %v1866
        %v2257 = vpack.c.bf16 %v1868, %v1868
        %v2258 = vpack.c.bf16 %v1871, %v1871
        %v2259 = vpack.c.bf16 %v1873, %v1873
        %v2260 = vpack.c.bf16 %v1876, %v1876
        %v2261 = vpack.c.bf16 %v1878, %v1878
        %v2262 = vpack.c.bf16 %v1881, %v1881
        %v2263 = vpack.c.bf16 %v1883, %v1883
        %v2264 = vpack.c.bf16 %v1886, %v1886
        %v2265 = vpack.c.bf16 %v1888, %v1888
        %v2266 = vpack.c.bf16 %v1891, %v1891
        %v2267 = vpack.c.bf16 %v1893, %v1893
        %s2268 = scalar_lea.vmem %s370, 64 [#allocation12]
        %2269 = vst [vmem:[%s2268] sm:$0xf] %v2252
        %2270 = vst [vmem:[%s2268 + $0x4] sm:$0xf] %v2253
        %2271 = vst [vmem:[%s2268 + $0x8] sm:$0xf] %v2254
        %2272 = vst [vmem:[%s2268 + $0xc] sm:$0xf] %v2255
        %2273 = vst [vmem:[%s2268 + $0x10] sm:$0xf] %v2256
        %2274 = vst [vmem:[%s2268 + $0x14] sm:$0xf] %v2257
        %2275 = vst [vmem:[%s2268 + $0x18] sm:$0xf] %v2258
        %2276 = vst [vmem:[%s2268 + $0x1c] sm:$0xf] %v2259
        %2277 = vst [vmem:[%s2268 + $0x20] sm:$0xf] %v2260
        %2278 = vst [vmem:[%s2268 + $0x24] sm:$0xf] %v2261
        %2279 = vst [vmem:[%s2268 + $0x28] sm:$0xf] %v2262
        %2280 = vst [vmem:[%s2268 + $0x2c] sm:$0xf] %v2263
        %2281 = vst [vmem:[%s2268 + $0x30] sm:$0xf] %v2264
        %2282 = vst [vmem:[%s2268 + $0x34] sm:$0xf] %v2265
        %2283 = vst [vmem:[%s2268 + $0x38] sm:$0xf] %v2266
        %2284 = vst [vmem:[%s2268 + $0x3c] sm:$0xf] %v2267
        %v2285 = vpack.c.bf16 %v2052, %v2052
        %v2286 = vpack.c.bf16 %v2054, %v2054
        %v2287 = vpack.c.bf16 %v2057, %v2057
        %v2288 = vpack.c.bf16 %v2059, %v2059
        %v2289 = vpack.c.bf16 %v2062, %v2062
        %v2290 = vpack.c.bf16 %v2064, %v2064
        %v2291 = vpack.c.bf16 %v2067, %v2067
        %v2292 = vpack.c.bf16 %v2069, %v2069
        %v2293 = vpack.c.bf16 %v2072, %v2072
        %v2294 = vpack.c.bf16 %v2074, %v2074
        %v2295 = vpack.c.bf16 %v2077, %v2077
        %v2296 = vpack.c.bf16 %v2079, %v2079
        %v2297 = vpack.c.bf16 %v2082, %v2082
        %v2298 = vpack.c.bf16 %v2084, %v2084
        %v2299 = vpack.c.bf16 %v2087, %v2087
        %v2300 = vpack.c.bf16 %v2089, %v2089
        %s2301 = scalar_lea.vmem %s377, 64 [#allocation14]
        %2302 = vst [vmem:[%s2301] sm:$0xf] %v2285
        %2303 = vst [vmem:[%s2301 + $0x4] sm:$0xf] %v2286
        %2304 = vst [vmem:[%s2301 + $0x8] sm:$0xf] %v2287
        %2305 = vst [vmem:[%s2301 + $0xc] sm:$0xf] %v2288
        %2306 = vst [vmem:[%s2301 + $0x10] sm:$0xf] %v2289
        %2307 = vst [vmem:[%s2301 + $0x14] sm:$0xf] %v2290
        %2308 = vst [vmem:[%s2301 + $0x18] sm:$0xf] %v2291
        %2309 = vst [vmem:[%s2301 + $0x1c] sm:$0xf] %v2292
        %2310 = vst [vmem:[%s2301 + $0x20] sm:$0xf] %v2293
        %2311 = vst [vmem:[%s2301 + $0x24] sm:$0xf] %v2294
        %2312 = vst [vmem:[%s2301 + $0x28] sm:$0xf] %v2295
        %2313 = vst [vmem:[%s2301 + $0x2c] sm:$0xf] %v2296
        %2314 = vst [vmem:[%s2301 + $0x30] sm:$0xf] %v2297
        %2315 = vst [vmem:[%s2301 + $0x34] sm:$0xf] %v2298
        %2316 = vst [vmem:[%s2301 + $0x38] sm:$0xf] %v2299
        %2317 = vst [vmem:[%s2301 + $0x3c] sm:$0xf] %v2300
        %s2318 = sand.u32 %s148, 1
        %s2319 = scalar_lea.sflag [#allocation4], %s2318
        %s2320 = sand.u32 %s148, 1
        %s2321 = smul.addr %s2320, 128
        %s2322 = scalar_lea.vmem [#allocation11], %s2321
        %s2323 = sand.u32 %s30, 1
        %s2324 = scalar_lea.sflag [#allocation13], %s2323
        %s2325 = sand.u32 %s174, 1
        %s2326 = smul.addr %s2325, 128
        %s2327 = scalar_lea.vmem [#allocation12], %s2326
        %s2328 = sand.u32 %s30, 1
        %s2329 = scalar_lea.sflag [#allocation13], %s2328
        %s2330 = sand.u32 %s200, 1
        %s2331 = smul.addr %s2330, 128
        %s2332 = scalar_lea.vmem [#allocation14], %s2331
        // Predicated region
        $region61: #{tpu_custom_call.1} parent=39 // pred_check
          %p2333 = pneg %p158
        $region62: #{tpu_custom_call.1} parent=39 // pred_check_branch
          %2335 = sbr.rel (%p2333) target = $region64
        $region63: #{tpu_custom_call.1} parent=39 // pred_region
          #allocation16 [shape = 'u32[6]{0}', space=smem, size = 0x18, scoped, tag = 'DMA stride descriptor']
          %s2336 = smul.u32 16, %s30
          %2338 = vsyncadd %s2319, 0
          %s2339 = smul.addr %s2336, 4
          %s2340 = scalar_lea.hbm %s5, %s2339
          %s2342 = sshll.u32 1, 14
          %s2343 = sxor.u32 4294967295, %s2342
          %s2346 = sshll.u32 7, 18
          %s2347 = sxor.u32 4294967295, %s2346
          %s2348 = sand.u32 0, %s2347
          %s2350 = sor.u32 %s2348, 0
          %s2351 = sshll.u32 %s2322, 4
          %s2352 = int_to_ptr.vmem [resolvable:$true] %s2351
          %s2353 = sshll.u32 %s2340, 4
          %s2354 = int_to_ptr.hbm [resolvable:$true] %s2353
          %2360 = sst [smem:[#allocation16]] 1024
          %s2361 = scalar_lea.smem [#allocation16], 1
          %2362 = sst [smem:[%s2361]] 2048
          %s2363 = scalar_lea.smem [#allocation16], 2
          %2364 = sst [smem:[%s2363]] 16
          %s2365 = scalar_lea.smem [#allocation16], 3
          %2366 = sst [smem:[%s2365]] 64
          %s2367 = scalar_lea.smem [#allocation16], 4
          %2368 = sst [smem:[%s2367]] 64
          %s2369 = scalar_lea.smem [#allocation16], 5
          %2370 = sst [smem:[%s2369]] 4
          %2372 = dma.general %s2352, 2048, %s2354, %s2319, [#allocation15], [#allocation16], %s2350, 0
        $region64: #{tpu_custom_call.1} parent=39 // pred_fallthru
          _
        // Predicated region
        $region65: #{tpu_custom_call.1} parent=39 // pred_check
          %p2373 = pneg %p184
        $region66: #{tpu_custom_call.1} parent=39 // pred_check_branch
          %2375 = sbr.rel (%p2373) target = $region68
        $region67: #{tpu_custom_call.1} parent=39 // pred_region
          #allocation18 [shape = 'u32[6]{0}', space=smem, size = 0x18, scoped, tag = 'DMA stride descriptor']
          %s2376 = smul.u32 16, %s30
          %2378 = vsyncadd %s2324, 0
          %s2379 = smul.addr %s2376, 4
          %s2380 = scalar_lea.hbm %s6, %s2379
          %s2382 = sshll.u32 1, 14
          %s2383 = sxor.u32 4294967295, %s2382
          %s2386 = sshll.u32 7, 18
          %s2387 = sxor.u32 4294967295, %s2386
          %s2388 = sand.u32 0, %s2387
          %s2390 = sor.u32 %s2388, 0
          %s2391 = sshll.u32 %s2327, 4
          %s2392 = int_to_ptr.vmem [resolvable:$true] %s2391
          %s2393 = sshll.u32 %s2380, 4
          %s2394 = int_to_ptr.hbm [resolvable:$true] %s2393
          %2400 = sst [smem:[#allocation18]] 1024
          %s2401 = scalar_lea.smem [#allocation18], 1
          %2402 = sst [smem:[%s2401]] 2048
          %s2403 = scalar_lea.smem [#allocation18], 2
          %2404 = sst [smem:[%s2403]] 16
          %s2405 = scalar_lea.smem [#allocation18], 3
          %2406 = sst [smem:[%s2405]] 64
          %s2407 = scalar_lea.smem [#allocation18], 4
          %2408 = sst [smem:[%s2407]] 64
          %s2409 = scalar_lea.smem [#allocation18], 5
          %2410 = sst [smem:[%s2409]] 4
          %2412 = dma.general %s2392, 2048, %s2394, %s2324, [#allocation17], [#allocation18], %s2390, 0
        $region68: #{tpu_custom_call.1} parent=39 // pred_fallthru
          _
        // Predicated region
        $region69: #{tpu_custom_call.1} parent=39 // pred_check
          %p2413 = pneg %p210
        $region70: #{tpu_custom_call.1} parent=39 // pred_check_branch
          %2415 = sbr.rel (%p2413) target = $region72
        $region71: #{tpu_custom_call.1} parent=39 // pred_region
          #allocation20 [shape = 'u32[6]{0}', space=smem, size = 0x18, scoped, tag = 'DMA stride descriptor']
          %s2416 = smul.u32 16, %s30
          %2418 = vsyncadd %s2329, 0
          %s2419 = smul.addr %s2416, 4
          %s2420 = scalar_lea.hbm %s7, %s2419
          %s2422 = sshll.u32 1, 14
          %s2423 = sxor.u32 4294967295, %s2422
          %s2426 = sshll.u32 7, 18
          %s2427 = sxor.u32 4294967295, %s2426
          %s2428 = sand.u32 0, %s2427
          %s2430 = sor.u32 %s2428, 0
          %s2431 = sshll.u32 %s2332, 4
          %s2432 = int_to_ptr.vmem [resolvable:$true] %s2431
          %s2433 = sshll.u32 %s2420, 4
          %s2434 = int_to_ptr.hbm [resolvable:$true] %s2433
          %2440 = sst [smem:[#allocation20]] 1024
          %s2441 = scalar_lea.smem [#allocation20], 1
          %2442 = sst [smem:[%s2441]] 2048
          %s2443 = scalar_lea.smem [#allocation20], 2
          %2444 = sst [smem:[%s2443]] 16
          %s2445 = scalar_lea.smem [#allocation20], 3
          %2446 = sst [smem:[%s2445]] 64
          %s2447 = scalar_lea.smem [#allocation20], 4
          %2448 = sst [smem:[%s2447]] 64
          %s2449 = scalar_lea.smem [#allocation20], 5
          %2450 = sst [smem:[%s2449]] 4
          %2452 = dma.general %s2432, 2048, %s2434, %s2329, [#allocation19], [#allocation20], %s2430, 0
        $region72: #{tpu_custom_call.1} parent=39 // pred_fallthru
          _
      $region40: #{tpu_custom_call.1} parent=5 // pred_fallthru
        _
      %p2453 = scmp.le.s32.totalorder 2, %s25
      // Predicated region
      $region73: #{tpu_custom_call.1} parent=5 // pred_check
        %p2454 = pneg %p2453
      $region74: #{tpu_custom_call.1} parent=5 // pred_check_branch
        %2456 = sbr.rel (%p2454) target = $region76
      $region75: #{tpu_custom_call.1} parent=5 // pred_region
        %s2457 = ssub.s32 %s25, 2
        // Predicated region
        $region77: #{tpu_custom_call.1} parent=75 // pred_check
          %p2458 = pneg %p164
        $region78: #{tpu_custom_call.1} parent=75 // pred_check_branch
          %2460 = sbr.rel (%p2458) target = $region80
        $region79: #{tpu_custom_call.1} parent=75 // pred_region
          %s2461 = sand.u32 %s149, 1
          %s2462 = scalar_lea.sflag [#allocation4], %s2461
          %s2463 = sand.u32 %s149, 1
          %s2464 = smul.addr %s2463, 128
          %s2465 = scalar_lea.vmem [#allocation11], %s2464
          %2467 = dma.done %s2462, 2048
        $region80: #{tpu_custom_call.1} parent=75 // pred_fallthru
          _
        // Predicated region
        $region81: #{tpu_custom_call.1} parent=75 // pred_check
          %p2468 = pneg %p190
        $region82: #{tpu_custom_call.1} parent=75 // pred_check_branch
          %2470 = sbr.rel (%p2468) target = $region84
        $region83: #{tpu_custom_call.1} parent=75 // pred_region
          %s2471 = sand.u32 %s31, 1
          %s2472 = scalar_lea.sflag [#allocation13], %s2471
          %s2473 = sand.u32 %s175, 1
          %s2474 = smul.addr %s2473, 128
          %s2475 = scalar_lea.vmem [#allocation12], %s2474
          %2477 = dma.done %s2472, 2048
        $region84: #{tpu_custom_call.1} parent=75 // pred_fallthru
          _
        // Predicated region
        $region85: #{tpu_custom_call.1} parent=75 // pred_check
          %p2478 = pneg %p216
        $region86: #{tpu_custom_call.1} parent=75 // pred_check_branch
          %2480 = sbr.rel (%p2478) target = $region88
        $region87: #{tpu_custom_call.1} parent=75 // pred_region
          %s2481 = sand.u32 %s31, 1
          %s2482 = scalar_lea.sflag [#allocation13], %s2481
          %s2483 = sand.u32 %s201, 1
          %s2484 = smul.addr %s2483, 128
          %s2485 = scalar_lea.vmem [#allocation14], %s2484
          %2487 = dma.done %s2482, 2048
        $region88: #{tpu_custom_call.1} parent=75 // pred_fallthru
          _
      $region76: #{tpu_custom_call.1} parent=5 // pred_fallthru
        _
    $region6: #{tpu_custom_call.1} parent=1 // loop_footer
      %s29 = sadd.s32 1, %s25
    $region7: #{tpu_custom_call.1} parent=1 // loop_footer_branch
      %24 = sbr.rel target = $region3
    $region8: #{tpu_custom_call.1} parent=1 // loop_exit
      _
    %2488 = vsyncpa [#allocation3], 1
    %s2489 = scalar_lea.sflag [#allocation3], 1
    %2490 = vsyncpa %s2489, 1
    %2491 = vsyncpa [#allocation6], 1
    %2492 = vsyncpa [#allocation9], 1
    %2493 = vsyncpa [#allocation4], 1
    %s2494 = scalar_lea.sflag [#allocation4], 1
    %2495 = vsyncpa %s2494, 1
    %2496 = vsyncpa [#allocation13], 1
    %s2497 = scalar_lea.sflag [#allocation13], 1
    %2498 = vsyncpa %s2497, 1

</llo_original>
